<compile_context>
chip_gen: v5e
topology: v5e:2x2
jax: 0.10.0
libtpu: 0.0.40
codegen_flags: <defaults>
</compile_context>

<pallas_src>
import functools

import jax
import jax.numpy as jnp
from jax.experimental import pallas as pl
from jax.experimental.pallas import tpu as pltpu


# ---------------------------------------------------------------------------
# Cheap wrapper-side layout helpers (one fused pad+transpose pass over the
# activation; tiny one-off weight rearrangements).
# ---------------------------------------------------------------------------
def _pad_space_to_depth(x_nhwc, pad):
    """Pad spatially, then fold 2x2 spatial blocks into channels.

    (N, H, W, C) -> (N, (H+2p)/2, (W+2p)/2, 4C) with channel packing
    (sh, sw, c), so a 4x4 / stride-2 conv on x becomes a 2x2 / stride-1 conv
    on the result.
    """
    N, H, W, C = x_nhwc.shape
    Hp, Wp = H + 2 * pad, W + 2 * pad
    assert Hp % 2 == 0 and Wp % 2 == 0, "even (padded) spatial dims required"
    xp = jnp.pad(x_nhwc, ((0, 0), (pad, pad), (pad, pad), (0, 0))) if pad else x_nhwc
    H2, W2 = Hp // 2, Wp // 2
    xr = xp.reshape(N, H2, 2, W2, 2, C)
    xr = jnp.transpose(xr, (0, 1, 3, 2, 4, 5))
    return xr.reshape(N, H2, W2, 4 * C)


def _weights_s2d(w_hwio):
    """(4, 4, Cin, Cout) stride-2 weights -> (4, 4*Cin, Cout) for the
    equivalent 2x2 / stride-1 conv over the space-to-depth input.
    Tap index = kh2*2 + kw2; channel packing = sh*2C + sw*C + cin."""
    KH, KW, Cin, Cout = w_hwio.shape
    assert KH == 4 and KW == 4
    w = w_hwio.reshape(2, 2, 2, 2, Cin, Cout)      # (kh2, sh, kw2, sw, ci, co)
    w = jnp.transpose(w, (0, 2, 1, 3, 4, 5))       # (kh2, kw2, sh, sw, ci, co)
    return w.reshape(4, 4 * Cin, Cout)


def _weights_2x2(w_hwio):
    """(2, 2, Cin, Cout) -> (4, Cin, Cout), tap index = kh*2 + kw."""
    KH, KW, Cin, Cout = w_hwio.shape
    assert KH == 2 and KW == 2
    return w_hwio.reshape(4, Cin, Cout)


# ---------------------------------------------------------------------------
# Pallas kernels
# ---------------------------------------------------------------------------
_TAPS = ((0, 0), (0, 1), (1, 0), (1, 1))


def _acc_2x2(get_patch, w_ref, ho, wo):
    """Sum of four shifted (ho*wo, Cin) @ (Cin, Cout) MXU matmuls, f32 acc."""
    cout = w_ref.shape[-1]
    acc = jnp.zeros((ho * wo, cout), jnp.float32)
    for idx, (kh, kw) in enumerate(_TAPS):
        acc = acc + jnp.dot(
            get_patch(kh, kw), w_ref[idx], preferred_element_type=jnp.float32
        )
    return acc


def _conv_lrelu_kernel(x_ref, w_ref, o_ref, *, ho, wo, slope):
    """2x2 / stride-1 valid conv over the (H2, W2, C) block + fused LeakyReLU."""
    cin = x_ref.shape[-1]

    def patch(kh, kw):
        xs = x_ref[pl.ds(kh, ho), pl.ds(kw, wo), :]          # (ho, wo, cin)
        return xs.reshape(ho * wo, cin)

    acc = _acc_2x2(patch, w_ref, ho, wo)
    y = jnp.where(acc >= 0.0, acc, slope * acc)              # f32 epilogue
    o_ref[...] = y.astype(o_ref.dtype)


def _conv_lrelu_cls_kernel(x_ref, w_ref, wc_ref, o_ref, *, ho, wo, ho2, wo2, slope):
    """conv2 (s2d 2x2 conv + LeakyReLU) fused with the 2x2 classifier conv.

    The conv2 output tile stays resident (never written to HBM); only the
    (ho2*wo2, 2*n_classes) logits block is stored.
    """
    cin = x_ref.shape[-1]
    c2 = w_ref.shape[-1]

    def patch(kh, kw):
        xs = x_ref[pl.ds(kh, ho), pl.ds(kw, wo), :]          # (ho, wo, cin)
        return xs.reshape(ho * wo, cin)

    acc = _acc_2x2(patch, w_ref, ho, wo)
    h = jnp.where(acc >= 0.0, acc, slope * acc)              # f32, (ho*wo, c2)
    h3 = h.reshape(ho, wo, c2).astype(x_ref.dtype)           # back to MXU dtype

    def patch2(kh, kw):
        return h3[kh:kh + ho2, kw:kw + wo2, :].reshape(ho2 * wo2, c2)

    logits = _acc_2x2(patch2, wc_ref, ho2, wo2)
    o_ref[...] = logits.astype(o_ref.dtype)


# ---------------------------------------------------------------------------
# pallas_call wrappers
# ---------------------------------------------------------------------------
def _conv1_pallas(x_nhwc, w1_hwio, *, slope, compute_dtype):
    N, H, W, Cin = x_nhwc.shape
    Cout = w1_hwio.shape[-1]
    Ho, Wo = H // 2, W // 2
    xs = _pad_space_to_depth(x_nhwc, 1).astype(compute_dtype)   # (N, Ho+1, Wo+1, 4Cin)
    ws = _weights_s2d(w1_hwio).astype(compute_dtype)
    _, H2, W2, C4 = xs.shape

    out = pl.pallas_call(
        functools.partial(_conv_lrelu_kernel, ho=Ho, wo=Wo, slope=slope),
        out_shape=jax.ShapeDtypeStruct((N, Ho * Wo, Cout), compute_dtype),
        grid_spec=pltpu.PrefetchScalarGridSpec(
            num_scalar_prefetch=0,
            grid=(N,),
            in_specs=[
                pl.BlockSpec((None, H2, W2, C4), lambda n: (n, 0, 0, 0)),
                pl.BlockSpec((4, C4, Cout), lambda n: (0, 0, 0)),
            ],
            out_specs=pl.BlockSpec((None, Ho * Wo, Cout), lambda n: (n, 0, 0)),
        ),
        compiler_params=pltpu.CompilerParams(
            dimension_semantics=("parallel",),
        ),
    )(xs, ws)
    return out.reshape(N, Ho, Wo, Cout)


def _conv2_cls_pallas(h_nhwc, w2_hwio, wcls_hwio, *, slope, compute_dtype):
    N, H, W, C1 = h_nhwc.shape
    C2 = w2_hwio.shape[-1]
    NCo = wcls_hwio.shape[-1]
    Ho, Wo = H // 2, W // 2          # conv2 output
    Ho2, Wo2 = Ho - 1, Wo - 1        # classifier (2x2, stride 1, valid) output
    xs = _pad_space_to_depth(h_nhwc, 1).astype(compute_dtype)
    ws = _weights_s2d(w2_hwio).astype(compute_dtype)
    wc = _weights_2x2(wcls_hwio).astype(compute_dtype)
    _, H2, W2, C4 = xs.shape

    out = pl.pallas_call(
        functools.partial(
            _conv_lrelu_cls_kernel, ho=Ho, wo=Wo, ho2=Ho2, wo2=Wo2, slope=slope
        ),
        out_shape=jax.ShapeDtypeStruct((N, Ho2 * Wo2, NCo), jnp.float32),
        grid_spec=pltpu.PrefetchScalarGridSpec(
            num_scalar_prefetch=0,
            grid=(N,),
            in_specs=[
                pl.BlockSpec((None, H2, W2, C4), lambda n: (n, 0, 0, 0)),
                pl.BlockSpec((4, C4, C2), lambda n: (0, 0, 0)),
                pl.BlockSpec((4, C2, NCo), lambda n: (0, 0, 0)),
            ],
            out_specs=pl.BlockSpec((None, Ho2 * Wo2, NCo), lambda n: (n, 0, 0)),
        ),
        compiler_params=pltpu.CompilerParams(
            dimension_semantics=("parallel",),
        ),
    )(xs, ws, wc)
    return out.reshape(N, Ho2, Wo2, NCo)


# ---------------------------------------------------------------------------
# PixelDiscriminator forward (all Conv2d in the spec use bias=False)
# ---------------------------------------------------------------------------
def pixel_discriminator_forward(x_nchw, params, n_classes, compute_dtype=jnp.bfloat16):
    x = jnp.transpose(x_nchw, (0, 2, 3, 1))                    # NCHW -> NHWC
    h = _conv1_pallas(x, params["conv1"], slope=0.2, compute_dtype=compute_dtype)
    # cls1 + cls2 fused along Cout; their conv is fused into conv2's kernel.
    w_cls = jnp.concatenate([params["cls1"], params["cls2"]], axis=-1)  # (2,2,C2,2*ncls)
    y = _conv2_cls_pallas(h, params["conv2"], w_cls, slope=0.2,
                          compute_dtype=compute_dtype)          # (N,H',W',2*ncls)
    # Channel axis is [cls1 outputs, cls2 outputs] == torch.cat(dim=1);
    # NCHW transpose + reshape reproduces torch's contiguous .view().
    out_nchw = jnp.transpose(y, (0, 3, 1, 2))
    return out_nchw.reshape(-1, 2 * n_classes)


# ---------------------------------------------------------------------------
# Deterministic parameter init (torch OIHW shapes, stored as HWIO)
# ---------------------------------------------------------------------------
def init_params(key, nc, ndf, n_classes):
    k1, k2, k3, k4 = jax.random.split(key, 4)

    def conv_w(k, cout, cin, kh, kw):
        w = jax.random.normal(k, (cout, cin, kh, kw), jnp.float32) * 0.05
        return jnp.transpose(w, (2, 3, 1, 0))                   # OIHW -> HWIO

    return {
        "conv1": conv_w(k1, ndf, nc, 4, 4),
        "conv2": conv_w(k2, ndf // 2, ndf, 4, 4),
        "cls1": conv_w(k3, n_classes, ndf // 2, 2, 2),
        "cls2": conv_w(k4, n_classes, ndf // 2, 2, 2),
    }


# ---------------------------------------------------------------------------
# Pure-JAX reference (lax.conv, f32) used only for the correctness check
# ---------------------------------------------------------------------------
def _ref_conv(x_nhwc, w_hwio, stride, pad):
    return jax.lax.conv_general_dilated(
        x_nhwc, w_hwio,
        window_strides=(stride, stride),
        padding=[(pad, pad), (pad, pad)],
        dimension_numbers=("NHWC", "HWIO", "NHWC"),
    )


def reference_forward(x_nchw, params, n_classes):
    lrelu = lambda v: jnp.where(v >= 0.0, v, 0.2 * v)
    x = jnp.transpose(x_nchw, (0, 2, 3, 1))
    h = lrelu(_ref_conv(x, params["conv1"], 2, 1))
    h = lrelu(_ref_conv(h, params["conv2"], 2, 1))
    src = _ref_conv(h, params["cls1"], 1, 0)
    tar = _ref_conv(h, params["cls2"], 1, 0)
    out = jnp.concatenate(
        [jnp.transpose(src, (0, 3, 1, 2)), jnp.transpose(tar, (0, 3, 1, 2))], axis=1
    )
    return out.reshape(-1, 2 * n_classes)


if __name__ == "__main__":
    # Small shapes consistent with the module (nc -> ndf -> ndf//2 -> n_classes)
    nc, ndf, n_classes = 16, 16, 4
    batch, spatial = 2, 16

    key = jax.random.PRNGKey(0)
    kx, kp = jax.random.split(key)
    x = jax.random.normal(kx, (batch, nc, spatial, spatial), jnp.float32)
    params = init_params(kp, nc, ndf, n_classes)

    ref = jax.block_until_ready(reference_forward(x, params, n_classes))

    # Optimized bf16-MXU path (f32 accumulation + f32 LeakyReLU epilogue).
    fwd_bf16 = jax.jit(
        functools.partial(pixel_discriminator_forward, compute_dtype=jnp.bfloat16),
        static_argnums=(2,),
    )
    out_bf16 = jax.block_until_ready(fwd_bf16(x, params, n_classes))
    assert out_bf16.shape == ref.shape, (out_bf16.shape, ref.shape)
    err_bf16 = float(jnp.max(jnp.abs(out_bf16 - ref)))
    assert jnp.allclose(out_bf16, ref, atol=3e-2, rtol=3e-2), err_bf16

    # Exact f32 path (same kernels, compute_dtype switch) for a tight check.
    fwd_f32 = jax.jit(
        functools.partial(pixel_discriminator_forward, compute_dtype=jnp.float32),
        static_argnums=(2,),
    )
    out_f32 = jax.block_until_ready(fwd_f32(x, params, n_classes))
    err_f32 = float(jnp.max(jnp.abs(out_f32 - ref)))
    assert jnp.allclose(out_f32, ref, atol=1e-4, rtol=1e-4), err_f32

    print("KERNEL_OK")
</pallas_src>

<mosaic_0001>
module attributes {stable_mosaic.version = 11 : i64} {
  func.func @_conv_lrelu_kernel(%arg0: i32, %arg1: memref<1x9x9x64xbf16, #tpu.memory_space<vmem>>, %arg2: memref<4x64x16xbf16, #tpu.memory_space<vmem>>, %arg3: memref<1x64x16xbf16, #tpu.memory_space<vmem>>) attributes {dimension_semantics = [#tpu.dimension_semantics<parallel>], iteration_bounds = array<i64: 2>, scalar_prefetch = 0 : i64, scratch_operands = 0 : i64, tpu.core_type = #tpu.core_type<tc>, window_params = [{transform_indices = @transform_0, window_bounds = array<i64: 1, 9, 9, 64>}, {pipeline_mode = #tpu.pipeline_mode<synchronous>, transform_indices = @transform_1, window_bounds = array<i64: 4, 64, 16>}, {transform_indices = @transform_2, window_bounds = array<i64: 1, 64, 16>}]} {
    %cst = arith.constant 0.000000e+00 : f32
    %0 = vector.broadcast %cst : f32 to vector<64x16xf32>
    %c0 = arith.constant 0 : index
    %c0_0 = arith.constant 0 : index
    %c0_1 = arith.constant 0 : index
    %c0_2 = arith.constant 0 : index
    %1 = vector.load %arg1[%c0, %c0_0, %c0_1, %c0_2] : memref<1x9x9x64xbf16, #tpu.memory_space<vmem>>, vector<1x8x8x64xbf16>
    %2 = vector.shape_cast %1 : vector<1x8x8x64xbf16> to vector<8x8x64xbf16>
    %3 = vector.shape_cast %2 : vector<8x8x64xbf16> to vector<64x64xbf16>
    %c0_3 = arith.constant 0 : index
    %c0_4 = arith.constant 0 : index
    %c0_5 = arith.constant 0 : index
    %4 = vector.load %arg2[%c0_3, %c0_4, %c0_5] : memref<4x64x16xbf16, #tpu.memory_space<vmem>>, vector<1x64x16xbf16>
    %5 = vector.shape_cast %4 : vector<1x64x16xbf16> to vector<64x16xbf16>
    %cst_6 = arith.constant dense<0.000000e+00> : vector<64x16xf32>
    %6 = tpu.matmul %3, %5, %cst_6 {dimension_numbers = #tpu.dot_dimension_numbers<[1], [0], [0], [1], [0, 0, 1, 1], [], []>} : vector<64x64xbf16>, vector<64x16xbf16>, vector<64x16xf32> -> vector<64x16xf32>
    %7 = arith.addf %0, %6 : vector<64x16xf32>
    %c0_7 = arith.constant 0 : index
    %c0_8 = arith.constant 0 : index
    %c1 = arith.constant 1 : index
    %c0_9 = arith.constant 0 : index
    %8 = vector.load %arg1[%c0_7, %c0_8, %c1, %c0_9] : memref<1x9x9x64xbf16, #tpu.memory_space<vmem>>, vector<1x8x8x64xbf16>
    %9 = vector.shape_cast %8 : vector<1x8x8x64xbf16> to vector<8x8x64xbf16>
    %10 = vector.shape_cast %9 : vector<8x8x64xbf16> to vector<64x64xbf16>
    %c1_10 = arith.constant 1 : index
    %c0_11 = arith.constant 0 : index
    %c0_12 = arith.constant 0 : index
    %11 = vector.load %arg2[%c1_10, %c0_11, %c0_12] : memref<4x64x16xbf16, #tpu.memory_space<vmem>>, vector<1x64x16xbf16>
    %12 = vector.shape_cast %11 : vector<1x64x16xbf16> to vector<64x16xbf16>
    %cst_13 = arith.constant dense<0.000000e+00> : vector<64x16xf32>
    %13 = tpu.matmul %10, %12, %cst_13 {dimension_numbers = #tpu.dot_dimension_numbers<[1], [0], [0], [1], [0, 0, 1, 1], [], []>} : vector<64x64xbf16>, vector<64x16xbf16>, vector<64x16xf32> -> vector<64x16xf32>
    %14 = arith.addf %7, %13 : vector<64x16xf32>
    %c0_14 = arith.constant 0 : index
    %c1_15 = arith.constant 1 : index
    %c0_16 = arith.constant 0 : index
    %c0_17 = arith.constant 0 : index
    %15 = vector.load %arg1[%c0_14, %c1_15, %c0_16, %c0_17] : memref<1x9x9x64xbf16, #tpu.memory_space<vmem>>, vector<1x8x8x64xbf16>
    %16 = vector.shape_cast %15 : vector<1x8x8x64xbf16> to vector<8x8x64xbf16>
    %17 = vector.shape_cast %16 : vector<8x8x64xbf16> to vector<64x64xbf16>
    %c2 = arith.constant 2 : index
    %c0_18 = arith.constant 0 : index
    %c0_19 = arith.constant 0 : index
    %18 = vector.load %arg2[%c2, %c0_18, %c0_19] : memref<4x64x16xbf16, #tpu.memory_space<vmem>>, vector<1x64x16xbf16>
    %19 = vector.shape_cast %18 : vector<1x64x16xbf16> to vector<64x16xbf16>
    %cst_20 = arith.constant dense<0.000000e+00> : vector<64x16xf32>
    %20 = tpu.matmul %17, %19, %cst_20 {dimension_numbers = #tpu.dot_dimension_numbers<[1], [0], [0], [1], [0, 0, 1, 1], [], []>} : vector<64x64xbf16>, vector<64x16xbf16>, vector<64x16xf32> -> vector<64x16xf32>
    %21 = arith.addf %14, %20 : vector<64x16xf32>
    %c0_21 = arith.constant 0 : index
    %c1_22 = arith.constant 1 : index
    %c1_23 = arith.constant 1 : index
    %c0_24 = arith.constant 0 : index
    %22 = vector.load %arg1[%c0_21, %c1_22, %c1_23, %c0_24] : memref<1x9x9x64xbf16, #tpu.memory_space<vmem>>, vector<1x8x8x64xbf16>
    %23 = vector.shape_cast %22 : vector<1x8x8x64xbf16> to vector<8x8x64xbf16>
    %24 = vector.shape_cast %23 : vector<8x8x64xbf16> to vector<64x64xbf16>
    %c3 = arith.constant 3 : index
    %c0_25 = arith.constant 0 : index
    %c0_26 = arith.constant 0 : index
    %25 = vector.load %arg2[%c3, %c0_25, %c0_26] : memref<4x64x16xbf16, #tpu.memory_space<vmem>>, vector<1x64x16xbf16>
    %26 = vector.shape_cast %25 : vector<1x64x16xbf16> to vector<64x16xbf16>
    %cst_27 = arith.constant dense<0.000000e+00> : vector<64x16xf32>
    %27 = tpu.matmul %24, %26, %cst_27 {dimension_numbers = #tpu.dot_dimension_numbers<[1], [0], [0], [1], [0, 0, 1, 1], [], []>} : vector<64x64xbf16>, vector<64x16xbf16>, vector<64x16xf32> -> vector<64x16xf32>
    %28 = arith.addf %21, %27 : vector<64x16xf32>
    %cst_28 = arith.constant 0.000000e+00 : f32
    %29 = vector.broadcast %cst_28 : f32 to vector<64x16xf32>
    %30 = arith.cmpf oge, %28, %29 : vector<64x16xf32>
    %cst_29 = arith.constant 2.000000e-01 : f32
    %31 = vector.broadcast %cst_29 : f32 to vector<64x16xf32>
    %32 = arith.mulf %31, %28 : vector<64x16xf32>
    %33 = arith.select %30, %28, %32 : vector<64x16xi1>, vector<64x16xf32>
    %34 = arith.truncf %33 : vector<64x16xf32> to vector<64x16xbf16>
    %c0_30 = arith.constant 0 : index
    %c0_31 = arith.constant 0 : index
    %c0_32 = arith.constant 0 : index
    %35 = vector.load %arg3[%c0_30, %c0_31, %c0_32] : memref<1x64x16xbf16, #tpu.memory_space<vmem>>, vector<1x64x16xbf16>
    %36 = vector.shape_cast %35 : vector<1x64x16xbf16> to vector<64x16xbf16>
    %37 = vector.shape_cast %34 : vector<64x16xbf16> to vector<1x64x16xbf16>
    tpu.vector_store %arg3[%c0_30, %c0_31, %c0_32], %37 {strides = array<i32>} : memref<1x64x16xbf16, #tpu.memory_space<vmem>>, vector<1x64x16xbf16>,
    return
  }
  func.func @transform_0(%arg0: i32) -> (i32, i32, i32, i32) {
    %c0_i32 = arith.constant 0 : i32
    %c0_i32_0 = arith.constant 0 : i32
    %c0_i32_1 = arith.constant 0 : i32
    %c0_i32_2 = arith.constant 0 : i32
    return %arg0, %c0_i32, %c0_i32_0, %c0_i32_1 : i32, i32, i32, i32
  }
  func.func @transform_1(%arg0: i32) -> (i32, i32, i32) {
    %c0_i32 = arith.constant 0 : i32
    %c0_i32_0 = arith.constant 0 : i32
    %c0_i32_1 = arith.constant 0 : i32
    %c0_i32_2 = arith.constant 0 : i32
    return %c0_i32, %c0_i32_0, %c0_i32_1 : i32, i32, i32
  }
  func.func @transform_2(%arg0: i32) -> (i32, i32, i32) {
    %c0_i32 = arith.constant 0 : i32
    %c0_i32_0 = arith.constant 0 : i32
    %c0_i32_1 = arith.constant 0 : i32
    return %arg0, %c0_i32, %c0_i32_0 : i32, i32, i32
  }
}

module attributes {stable_mosaic.version = 11 : i64} {
  func.func @_conv_lrelu_cls_kernel(%arg0: i32, %arg1: memref<1x5x5x64xbf16, #tpu.memory_space<vmem>>, %arg2: memref<4x64x8xbf16, #tpu.memory_space<vmem>>, %arg3: memref<4x8x8xbf16, #tpu.memory_space<vmem>>, %arg4: memref<1x9x8xf32, #tpu.memory_space<vmem>>) attributes {dimension_semantics = [#tpu.dimension_semantics<parallel>], iteration_bounds = array<i64: 2>, scalar_prefetch = 0 : i64, scratch_operands = 0 : i64, tpu.core_type = #tpu.core_type<tc>, window_params = [{transform_indices = @transform_0, window_bounds = array<i64: 1, 5, 5, 64>}, {pipeline_mode = #tpu.pipeline_mode<synchronous>, transform_indices = @transform_1, window_bounds = array<i64: 4, 64, 8>}, {pipeline_mode = #tpu.pipeline_mode<synchronous>, transform_indices = @transform_2, window_bounds = array<i64: 4, 8, 8>}, {transform_indices = @transform_3, window_bounds = array<i64: 1, 9, 8>}]} {
    %cst = arith.constant 0.000000e+00 : f32
    %0 = vector.broadcast %cst : f32 to vector<16x8xf32>
    %c0 = arith.constant 0 : index
    %c0_0 = arith.constant 0 : index
    %c0_1 = arith.constant 0 : index
    %c0_2 = arith.constant 0 : index
    %1 = vector.load %arg1[%c0, %c0_0, %c0_1, %c0_2] : memref<1x5x5x64xbf16, #tpu.memory_space<vmem>>, vector<1x4x4x64xbf16>
    %2 = vector.shape_cast %1 : vector<1x4x4x64xbf16> to vector<4x4x64xbf16>
    %3 = vector.shape_cast %2 : vector<4x4x64xbf16> to vector<16x64xbf16>
    %c0_3 = arith.constant 0 : index
    %c0_4 = arith.constant 0 : index
    %c0_5 = arith.constant 0 : index
    %4 = vector.load %arg2[%c0_3, %c0_4, %c0_5] : memref<4x64x8xbf16, #tpu.memory_space<vmem>>, vector<1x64x8xbf16>
    %5 = vector.shape_cast %4 : vector<1x64x8xbf16> to vector<64x8xbf16>
    %cst_6 = arith.constant dense<0.000000e+00> : vector<16x8xf32>
    %6 = tpu.matmul %3, %5, %cst_6 {dimension_numbers = #tpu.dot_dimension_numbers<[1], [0], [0], [1], [0, 0, 1, 1], [], []>} : vector<16x64xbf16>, vector<64x8xbf16>, vector<16x8xf32> -> vector<16x8xf32>
    %7 = arith.addf %0, %6 : vector<16x8xf32>
    %c0_7 = arith.constant 0 : index
    %c0_8 = arith.constant 0 : index
    %c1 = arith.constant 1 : index
    %c0_9 = arith.constant 0 : index
    %8 = vector.load %arg1[%c0_7, %c0_8, %c1, %c0_9] : memref<1x5x5x64xbf16, #tpu.memory_space<vmem>>, vector<1x4x4x64xbf16>
    %9 = vector.shape_cast %8 : vector<1x4x4x64xbf16> to vector<4x4x64xbf16>
    %10 = vector.shape_cast %9 : vector<4x4x64xbf16> to vector<16x64xbf16>
    %c1_10 = arith.constant 1 : index
    %c0_11 = arith.constant 0 : index
    %c0_12 = arith.constant 0 : index
    %11 = vector.load %arg2[%c1_10, %c0_11, %c0_12] : memref<4x64x8xbf16, #tpu.memory_space<vmem>>, vector<1x64x8xbf16>
    %12 = vector.shape_cast %11 : vector<1x64x8xbf16> to vector<64x8xbf16>
    %cst_13 = arith.constant dense<0.000000e+00> : vector<16x8xf32>
    %13 = tpu.matmul %10, %12, %cst_13 {dimension_numbers = #tpu.dot_dimension_numbers<[1], [0], [0], [1], [0, 0, 1, 1], [], []>} : vector<16x64xbf16>, vector<64x8xbf16>, vector<16x8xf32> -> vector<16x8xf32>
    %14 = arith.addf %7, %13 : vector<16x8xf32>
    %c0_14 = arith.constant 0 : index
    %c1_15 = arith.constant 1 : index
    %c0_16 = arith.constant 0 : index
    %c0_17 = arith.constant 0 : index
    %15 = vector.load %arg1[%c0_14, %c1_15, %c0_16, %c0_17] : memref<1x5x5x64xbf16, #tpu.memory_space<vmem>>, vector<1x4x4x64xbf16>
    %16 = vector.shape_cast %15 : vector<1x4x4x64xbf16> to vector<4x4x64xbf16>
    %17 = vector.shape_cast %16 : vector<4x4x64xbf16> to vector<16x64xbf16>
    %c2 = arith.constant 2 : index
    %c0_18 = arith.constant 0 : index
    %c0_19 = arith.constant 0 : index
    %18 = vector.load %arg2[%c2, %c0_18, %c0_19] : memref<4x64x8xbf16, #tpu.memory_space<vmem>>, vector<1x64x8xbf16>
    %19 = vector.shape_cast %18 : vector<1x64x8xbf16> to vector<64x8xbf16>
    %cst_20 = arith.constant dense<0.000000e+00> : vector<16x8xf32>
    %20 = tpu.matmul %17, %19, %cst_20 {dimension_numbers = #tpu.dot_dimension_numbers<[1], [0], [0], [1], [0, 0, 1, 1], [], []>} : vector<16x64xbf16>, vector<64x8xbf16>, vector<16x8xf32> -> vector<16x8xf32>
    %21 = arith.addf %14, %20 : vector<16x8xf32>
    %c0_21 = arith.constant 0 : index
    %c1_22 = arith.constant 1 : index
    %c1_23 = arith.constant 1 : index
    %c0_24 = arith.constant 0 : index
    %22 = vector.load %arg1[%c0_21, %c1_22, %c1_23, %c0_24] : memref<1x5x5x64xbf16, #tpu.memory_space<vmem>>, vector<1x4x4x64xbf16>
    %23 = vector.shape_cast %22 : vector<1x4x4x64xbf16> to vector<4x4x64xbf16>
    %24 = vector.shape_cast %23 : vector<4x4x64xbf16> to vector<16x64xbf16>
    %c3 = arith.constant 3 : index
    %c0_25 = arith.constant 0 : index
    %c0_26 = arith.constant 0 : index
    %25 = vector.load %arg2[%c3, %c0_25, %c0_26] : memref<4x64x8xbf16, #tpu.memory_space<vmem>>, vector<1x64x8xbf16>
    %26 = vector.shape_cast %25 : vector<1x64x8xbf16> to vector<64x8xbf16>
    %cst_27 = arith.constant dense<0.000000e+00> : vector<16x8xf32>
    %27 = tpu.matmul %24, %26, %cst_27 {dimension_numbers = #tpu.dot_dimension_numbers<[1], [0], [0], [1], [0, 0, 1, 1], [], []>} : vector<16x64xbf16>, vector<64x8xbf16>, vector<16x8xf32> -> vector<16x8xf32>
    %28 = arith.addf %21, %27 : vector<16x8xf32>
    %cst_28 = arith.constant 0.000000e+00 : f32
    %29 = vector.broadcast %cst_28 : f32 to vector<16x8xf32>
    %30 = arith.cmpf oge, %28, %29 : vector<16x8xf32>
    %cst_29 = arith.constant 2.000000e-01 : f32
    %31 = vector.broadcast %cst_29 : f32 to vector<16x8xf32>
    %32 = arith.mulf %31, %28 : vector<16x8xf32>
    %33 = arith.select %30, %28, %32 : vector<16x8xi1>, vector<16x8xf32>
    %34 = vector.shape_cast %33 : vector<16x8xf32> to vector<4x4x8xf32>
    %35 = arith.truncf %34 : vector<4x4x8xf32> to vector<4x4x8xbf16>
    %cst_30 = arith.constant 0.000000e+00 : f32
    %36 = vector.broadcast %cst_30 : f32 to vector<9x8xf32>
    %37 = vector.extract_strided_slice %35 {offsets = [0, 0, 0], sizes = [3, 3, 8], strides = [1, 1, 1]} : vector<4x4x8xbf16> to vector<3x3x8xbf16>
    %38 = vector.shape_cast %37 : vector<3x3x8xbf16> to vector<9x8xbf16>
    %c0_31 = arith.constant 0 : index
    %c0_32 = arith.constant 0 : index
    %c0_33 = arith.constant 0 : index
    %39 = vector.load %arg3[%c0_31, %c0_32, %c0_33] : memref<4x8x8xbf16, #tpu.memory_space<vmem>>, vector<1x8x8xbf16>
    %40 = vector.shape_cast %39 : vector<1x8x8xbf16> to vector<8x8xbf16>
    %cst_34 = arith.constant dense<0.000000e+00> : vector<9x8xf32>
    %41 = tpu.matmul %38, %40, %cst_34 {dimension_numbers = #tpu.dot_dimension_numbers<[1], [0], [0], [1], [0, 0, 1, 1], [], []>} : vector<9x8xbf16>, vector<8x8xbf16>, vector<9x8xf32> -> vector<9x8xf32>
    %42 = arith.addf %36, %41 : vector<9x8xf32>
    %43 = vector.extract_strided_slice %35 {offsets = [0, 1, 0], sizes = [3, 3, 8], strides = [1, 1, 1]} : vector<4x4x8xbf16> to vector<3x3x8xbf16>
    %44 = vector.shape_cast %43 : vector<3x3x8xbf16> to vector<9x8xbf16>
    %c1_35 = arith.constant 1 : index
    %c0_36 = arith.constant 0 : index
    %c0_37 = arith.constant 0 : index
    %45 = vector.load %arg3[%c1_35, %c0_36, %c0_37] : memref<4x8x8xbf16, #tpu.memory_space<vmem>>, vector<1x8x8xbf16>
    %46 = vector.shape_cast %45 : vector<1x8x8xbf16> to vector<8x8xbf16>
    %cst_38 = arith.constant dense<0.000000e+00> : vector<9x8xf32>
    %47 = tpu.matmul %44, %46, %cst_38 {dimension_numbers = #tpu.dot_dimension_numbers<[1], [0], [0], [1], [0, 0, 1, 1], [], []>} : vector<9x8xbf16>, vector<8x8xbf16>, vector<9x8xf32> -> vector<9x8xf32>
    %48 = arith.addf %42, %47 : vector<9x8xf32>
    %49 = vector.extract_strided_slice %35 {offsets = [1, 0, 0], sizes = [3, 3, 8], strides = [1, 1, 1]} : vector<4x4x8xbf16> to vector<3x3x8xbf16>
    %50 = vector.shape_cast %49 : vector<3x3x8xbf16> to vector<9x8xbf16>
    %c2_39 = arith.constant 2 : index
    %c0_40 = arith.constant 0 : index
    %c0_41 = arith.constant 0 : index
    %51 = vector.load %arg3[%c2_39, %c0_40, %c0_41] : memref<4x8x8xbf16, #tpu.memory_space<vmem>>, vector<1x8x8xbf16>
    %52 = vector.shape_cast %51 : vector<1x8x8xbf16> to vector<8x8xbf16>
    %cst_42 = arith.constant dense<0.000000e+00> : vector<9x8xf32>
    %53 = tpu.matmul %50, %52, %cst_42 {dimension_numbers = #tpu.dot_dimension_numbers<[1], [0], [0], [1], [0, 0, 1, 1], [], []>} : vector<9x8xbf16>, vector<8x8xbf16>, vector<9x8xf32> -> vector<9x8xf32>
    %54 = arith.addf %48, %53 : vector<9x8xf32>
    %55 = vector.extract_strided_slice %35 {offsets = [1, 1, 0], sizes = [3, 3, 8], strides = [1, 1, 1]} : vector<4x4x8xbf16> to vector<3x3x8xbf16>
    %56 = vector.shape_cast %55 : vector<3x3x8xbf16> to vector<9x8xbf16>
    %c3_43 = arith.constant 3 : index
    %c0_44 = arith.constant 0 : index
    %c0_45 = arith.constant 0 : index
    %57 = vector.load %arg3[%c3_43, %c0_44, %c0_45] : memref<4x8x8xbf16, #tpu.memory_space<vmem>>, vector<1x8x8xbf16>
    %58 = vector.shape_cast %57 : vector<1x8x8xbf16> to vector<8x8xbf16>
    %cst_46 = arith.constant dense<0.000000e+00> : vector<9x8xf32>
    %59 = tpu.matmul %56, %58, %cst_46 {dimension_numbers = #tpu.dot_dimension_numbers<[1], [0], [0], [1], [0, 0, 1, 1], [], []>} : vector<9x8xbf16>, vector<8x8xbf16>, vector<9x8xf32> -> vector<9x8xf32>
    %60 = arith.addf %54, %59 : vector<9x8xf32>
    %c0_47 = arith.constant 0 : index
    %c0_48 = arith.constant 0 : index
    %c0_49 = arith.constant 0 : index
    %61 = vector.load %arg4[%c0_47, %c0_48, %c0_49] : memref<1x9x8xf32, #tpu.memory_space<vmem>>, vector<1x9x8xf32>
    %62 = vector.shape_cast %61 : vector<1x9x8xf32> to vector<9x8xf32>
    %63 = vector.shape_cast %60 : vector<9x8xf32> to vector<1x9x8xf32>
    tpu.vector_store %arg4[%c0_47, %c0_48, %c0_49], %63 {strides = array<i32>} : memref<1x9x8xf32, #tpu.memory_space<vmem>>, vector<1x9x8xf32>,
    return
  }
  func.func @transform_0(%arg0: i32) -> (i32, i32, i32, i32) {
    %c0_i32 = arith.constant 0 : i32
    %c0_i32_0 = arith.constant 0 : i32
    %c0_i32_1 = arith.constant 0 : i32
    %c0_i32_2 = arith.constant 0 : i32
    return %arg0, %c0_i32, %c0_i32_0, %c0_i32_1 : i32, i32, i32, i32
  }
  func.func @transform_1(%arg0: i32) -> (i32, i32, i32) {
    %c0_i32 = arith.constant 0 : i32
    %c0_i32_0 = arith.constant 0 : i32
    %c0_i32_1 = arith.constant 0 : i32
    %c0_i32_2 = arith.constant 0 : i32
    return %c0_i32, %c0_i32_0, %c0_i32_1 : i32, i32, i32
  }
  func.func @transform_2(%arg0: i32) -> (i32, i32, i32) {
    %c0_i32 = arith.constant 0 : i32
    %c0_i32_0 = arith.constant 0 : i32
    %c0_i32_1 = arith.constant 0 : i32
    %c0_i32_2 = arith.constant 0 : i32
    return %c0_i32, %c0_i32_0, %c0_i32_1 : i32, i32, i32
  }
  func.func @transform_3(%arg0: i32) -> (i32, i32, i32) {
    %c0_i32 = arith.constant 0 : i32
    %c0_i32_0 = arith.constant 0 : i32
    %c0_i32_1 = arith.constant 0 : i32
    return %arg0, %c0_i32, %c0_i32_0 : i32, i32, i32
  }
}

</mosaic_0001>

<llo_original>
// kernel: pixel_discriminator_forward.2
$region0: #{pixel_discriminator_forward.2}
  #allocation0 [shape = 'u32[]', space=smem, size = 0x4, offset = 0x4, fixed_abs, tag = 'smem constant byte address 0x4 - core index']
  #allocation1 [shape = 'u32[72,128]{1,0:T(1,128)}', space=vmem, size = 0x9000, scoped, tag = 'internal scratch']
  %s0 = inlined_call_operand.vmem [shape: bf16[2,9,9,64], index: 0, kind: input, shape index: {}]
  %s1 = inlined_call_operand.vmem [shape: bf16[4,64,16], index: 1, kind: input, shape index: {}]
  %s2 = inlined_call_operand.vmem [shape: bf16[2,64,16], index: 2, kind: output, shape index: {}]
  %s3 = sld [smem:[#allocation0]]
  $region41: #{pixel_discriminator_forward.2} parent=0
    _
  %s5 = ssub.s32 1, %s3
  %s6 = scalar_select 0, %s5, %s3
  loop: start=0, step=1, limit=4
  $region2: #{pixel_discriminator_forward.2} parent=0 // loop_pre_header
    _
  $region3: #{pixel_discriminator_forward.2} parent=0 // loop_header
    %s8 = sphi 0, %s12
    %p9 = scmp.ge.s32.totalorder %s8, 4
    %s18 = sphi 0, %s20
    %s21 = sphi 0, %s18
    %s22 = sphi 0, %s21
    %s38 = sphi 0, %s22
    %s42 = sphi 0, %s42
    %s44 = sphi 0, %s42
    %s45 = sphi 0, %s44
    %s59 = sphi 0, %s45
    %s65 = sphi 0, %s67
    %s68 = sphi 0, %s65
    %s69 = sphi 0, %s68
    %s85 = sphi 0, %s69
  $region4: #{pixel_discriminator_forward.2} parent=0 // loop_header_branch
    %11 = sbr.rel (%p9) target = $region8
  $region5: #{pixel_discriminator_forward.2} parent=0 // loop_body
    %s13 = ssub.s32 %s8, 1
    %s14 = ssub.s32 %s8, 2
    %s15 = sadd.s32 %s8, 1
    %s16 = ssub.s32 %s8, %s15
    %p17 = scmp.eq.s32.totalorder %s16, 0
    %s19 = sadd.s32 %s18, 1
    %s20 = scalar_select %p17, %s18, %s19
    %p23 = pneg %p17
    %p24 = scmp.eq.s32.totalorder %s8, 1
    %p25 = por %p23, %p24
    %p26 = scmp.ne.s32.totalorder %s18, %s21
    %p27 = scmp.eq.s32.totalorder %s8, 0
    %p28 = por %p26, %p27
    %p29 = scmp.ne.s32.totalorder %s18, %s21
    %p30 = scmp.eq.s32.totalorder %s13, 1
    %p31 = por %p29, %p30
    %p32 = scmp.ne.s32.totalorder %s21, %s22
    %p33 = scmp.eq.s32.totalorder %s13, 0
    %p34 = por %p32, %p33
    %p35 = scmp.ne.s32.totalorder %s21, %s22
    %p36 = scmp.eq.s32.totalorder %s14, 1
    %p37 = por %p35, %p36
    %p39 = scmp.ne.s32.totalorder %s22, %s38
    %p40 = scmp.eq.s32.totalorder %s14, 0
    %p41 = por %p39, %p40
    %s43 = sadd.s32 %s42, 1
    %p46 = scmp.eq.s32.totalorder %s8, 1
    %p47 = scmp.ne.s32.totalorder %s42, %s44
    %p48 = scmp.eq.s32.totalorder %s8, 0
    %p49 = por %p47, %p48
    %p50 = scmp.ne.s32.totalorder %s42, %s44
    %p51 = scmp.eq.s32.totalorder %s13, 1
    %p52 = por %p50, %p51
    %p53 = scmp.ne.s32.totalorder %s44, %s45
    %p54 = scmp.eq.s32.totalorder %s13, 0
    %p55 = por %p53, %p54
    %p56 = scmp.ne.s32.totalorder %s44, %s45
    %p57 = scmp.eq.s32.totalorder %s14, 1
    %p58 = por %p56, %p57
    %p60 = scmp.ne.s32.totalorder %s45, %s59
    %p61 = scmp.eq.s32.totalorder %s14, 0
    %p62 = por %p60, %p61
    %s63 = ssub.s32 %s8, %s15
    %p64 = scmp.eq.s32.totalorder %s63, 0
    %s66 = sadd.s32 %s65, 1
    %s67 = scalar_select %p64, %s65, %s66
    %p70 = pneg %p64
    %p71 = scmp.eq.s32.totalorder %s8, 1
    %p72 = por %p70, %p71
    %p73 = scmp.ne.s32.totalorder %s65, %s68
    %p74 = scmp.eq.s32.totalorder %s8, 0
    %p75 = por %p73, %p74
    %p76 = scmp.ne.s32.totalorder %s65, %s68
    %p77 = scmp.eq.s32.totalorder %s13, 1
    %p78 = por %p76, %p77
    %p79 = scmp.ne.s32.totalorder %s68, %s69
    %p80 = scmp.eq.s32.totalorder %s13, 0
    %p81 = por %p79, %p80
    %p82 = scmp.ne.s32.totalorder %s68, %s69
    %p83 = scmp.eq.s32.totalorder %s14, 1
    %p84 = por %p82, %p83
    %p86 = scmp.ne.s32.totalorder %s69, %s85
    %p87 = scmp.eq.s32.totalorder %s14, 0
    %p88 = por %p86, %p87
    %p89 = scmp.le.s32.totalorder 1, %s8
    %p90 = scmp.lt.s32.totalorder %s8, 3
    %p91 = pnand %p89, %p90
    %p92 = pneg %p91
    // Predicated region
    $region9: #{pixel_discriminator_forward.2} parent=5 // pred_check
      _
    $region10: #{pixel_discriminator_forward.2} parent=5 // pred_check_branch
      %94 = sbr.rel (%p91) target = $region12
    $region11: #{pixel_discriminator_forward.2} parent=5 // pred_region
      %s95 = ssub.s32 %s8, 1
      // Predicated region
      $region13: #{pixel_discriminator_forward.2} parent=11 // pred_check
        %p96 = pneg %p55
      $region14: #{pixel_discriminator_forward.2} parent=11 // pred_check_branch
        %98 = sbr.rel (%p96) target = $region16
      $region15: #{pixel_discriminator_forward.2} parent=11 // pred_region
        _
      $region16: #{pixel_discriminator_forward.2} parent=11 // pred_fallthru
        _
    $region12: #{pixel_discriminator_forward.2} parent=5 // pred_fallthru
      _
    %p99 = scmp.lt.s32.totalorder %s8, 2
    // Predicated region
    $region17: #{pixel_discriminator_forward.2} parent=5 // pred_check
      %p100 = pneg %p99
    $region18: #{pixel_discriminator_forward.2} parent=5 // pred_check_branch
      %102 = sbr.rel (%p100) target = $region20
    $region19: #{pixel_discriminator_forward.2} parent=5 // pred_region
      // Predicated region
      $region21: #{pixel_discriminator_forward.2} parent=19 // pred_check
        %p103 = pneg %p28
      $region22: #{pixel_discriminator_forward.2} parent=19 // pred_check_branch
        %105 = sbr.rel (%p103) target = $region24
      $region23: #{pixel_discriminator_forward.2} parent=19 // pred_region
        %p106 = scmp.lt.s32.totalorder %s8, 1
        %s107 = scalar_select %p106, %s8, 1
        %s108 = smul.addr %s107, 18
        %s109 = smul.addr %s108, 4
        %s110 = scalar_lea.vmem %s0, %s109
      $region24: #{pixel_discriminator_forward.2} parent=19 // pred_fallthru
        _
    $region20: #{pixel_discriminator_forward.2} parent=5 // pred_fallthru
      _
    %p111 = scmp.le.s32.totalorder 1, %s8
    %p112 = scmp.lt.s32.totalorder %s8, 3
    %p113 = pnand %p111, %p112
    %p114 = pneg %p113
    // Predicated region
    $region25: #{pixel_discriminator_forward.2} parent=5 // pred_check
      _
    $region26: #{pixel_discriminator_forward.2} parent=5 // pred_check_branch
      %116 = sbr.rel (%p113) target = $region28
    $region27: #{pixel_discriminator_forward.2} parent=5 // pred_region
      %s117 = ssub.s32 %s8, 1
      %p118 = scmp.lt.s32.totalorder %s13, 1
      %s119 = scalar_select %p118, %s13, 1
      %s120 = smul.addr %s119, 18
      %s121 = smul.addr %s120, 4
      %s122 = scalar_lea.vmem %s0, %s121
      %p123 = pneg %p34
      %p124 = pneg %p31
      %p125 = pneg %p55
      %p126 = pneg %p52
      %p127 = pneg %p81
      %p128 = pneg %p78
      %p129 = scmp.lt.s32.totalorder %s13, 1
      %s130 = scalar_select %p129, %s13, 1
      %s131 = smul.addr %s130, 8
      %s132 = smul.addr %s131, 4
      %s133 = scalar_lea.vmem %s2, %s132
      %p134 = scmp.lt.s32.totalorder %s13, 1
      %s135 = scalar_select %p134, %s13, 1
      %s136 = smul.addr %s135, 18
      %s137 = smul.addr %s136, 4
      %s138 = scalar_lea.vmem %s0, %s137
      %p139 = scmp.lt.s32.totalorder %s13, 1
      %s140 = scalar_select %p139, %s13, 1
      %s141 = smul.addr %s140, 8
      %s142 = smul.addr %s141, 4
      %s143 = scalar_lea.vmem %s2, %s142
      %v145 = vld [vmem:[%s138] sm:$0xf]
      %v146 = vld [vmem:[%s138 + $0x8] sm:$0xf]
      %v147 = vld [vmem:[%s138 + $0x10] sm:$0xf]
      %v148 = vld [vmem:[%s138 + $0x18] sm:$0xf]
      %v149 = vld [vmem:[%s138 + $0x20] sm:$0xf]
      %v150 = vld [vmem:[%s138 + $0x28] sm:$0xf]
      %v151 = vld [vmem:[%s138 + $0x30] sm:$0xf]
      %v152 = vld [vmem:[%s138 + $0x38] sm:$0xf]
      %v153 = vld [vmem:[%s1] sm:$0xf]
      %v154 = vld [vmem:[%s1 + $0x4] sm:$0xf]
      %v155 = vld [vmem:[%s1 + $0x8] sm:$0xf]
      %v156 = vld [vmem:[%s1 + $0xc] sm:$0xf]
      %v157 = vld [vmem:[%s1 + $0x10] sm:$0xf]
      %v158 = vld [vmem:[%s1 + $0x14] sm:$0xf]
      %v159 = vld [vmem:[%s1 + $0x18] sm:$0xf]
      %v160 = vld [vmem:[%s1 + $0x1c] sm:$0xf]
      %v161 = vld [vmem:[%s138 + $0x4] sm:$0x1]
      %v162 = vld [vmem:[%s138 + $0xc] sm:$0x1]
      %v163 = vld [vmem:[%s138 + $0x14] sm:$0x1]
      %v164 = vld [vmem:[%s138 + $0x1c] sm:$0x1]
      %v165 = vld [vmem:[%s138 + $0x24] sm:$0x1]
      %v166 = vld [vmem:[%s138 + $0x2c] sm:$0x1]
      %v167 = vld [vmem:[%s138 + $0x34] sm:$0x1]
      %v168 = vld [vmem:[%s138 + $0x3c] sm:$0x1]
      %vm169 = vsmask.f32 3328
      %vm170 = vsmask.f32 7440
      %vm171 = vmor %vm169, %vm170
      %v173 = vshrl.u32 %v145, 16
      %v175 = vrot.slane %v173, 4
      %v176 = vshll.u32 %v145, 16
      %v178 = vrot.slane %v176, 5
      %v179 = vor.u32 %v175, %v178
      %v180 = vrot.slane %v179, 4
      %v182 = vshll.u32 %v161, 16
      %v184 = vrot.slane %v182, 5
      %v185 = vsel %vm171, %v180, %v184
      %v187 = vshrl.u32 %v146, 16
      %v189 = vrot.slane %v187, 4
      %v190 = vshll.u32 %v146, 16
      %v192 = vrot.slane %v190, 5
      %v193 = vor.u32 %v189, %v192
      %v194 = vrot.slane %v193, 4
      %v196 = vshll.u32 %v162, 16
      %v198 = vrot.slane %v196, 5
      %v199 = vsel %vm171, %v194, %v198
      %v201 = vshrl.u32 %v147, 16
      %v203 = vrot.slane %v201, 4
      %v204 = vshll.u32 %v147, 16
      %v206 = vrot.slane %v204, 5
      %v207 = vor.u32 %v203, %v206
      %v208 = vrot.slane %v207, 4
      %v210 = vshll.u32 %v163, 16
      %v212 = vrot.slane %v210, 5
      %v213 = vsel %vm171, %v208, %v212
      %v215 = vshrl.u32 %v148, 16
      %v217 = vrot.slane %v215, 4
      %v218 = vshll.u32 %v148, 16
      %v220 = vrot.slane %v218, 5
      %v221 = vor.u32 %v217, %v220
      %v222 = vrot.slane %v221, 4
      %v224 = vshll.u32 %v164, 16
      %v226 = vrot.slane %v224, 5
      %v227 = vsel %vm171, %v222, %v226
      %v229 = vshrl.u32 %v149, 16
      %v231 = vrot.slane %v229, 4
      %v232 = vshll.u32 %v149, 16
      %v234 = vrot.slane %v232, 5
      %v235 = vor.u32 %v231, %v234
      %v236 = vrot.slane %v235, 4
      %v238 = vshll.u32 %v165, 16
      %v240 = vrot.slane %v238, 5
      %v241 = vsel %vm171, %v236, %v240
      %v243 = vshrl.u32 %v150, 16
      %v245 = vrot.slane %v243, 4
      %v246 = vshll.u32 %v150, 16
      %v248 = vrot.slane %v246, 5
      %v249 = vor.u32 %v245, %v248
      %v250 = vrot.slane %v249, 4
      %v252 = vshll.u32 %v166, 16
      %v254 = vrot.slane %v252, 5
      %v255 = vsel %vm171, %v250, %v254
      %v257 = vshrl.u32 %v151, 16
      %v259 = vrot.slane %v257, 4
      %v260 = vshll.u32 %v151, 16
      %v262 = vrot.slane %v260, 5
      %v263 = vor.u32 %v259, %v262
      %v264 = vrot.slane %v263, 4
      %v266 = vshll.u32 %v167, 16
      %v268 = vrot.slane %v266, 5
      %v269 = vsel %vm171, %v264, %v268
      %v271 = vshrl.u32 %v152, 16
      %v273 = vrot.slane %v271, 4
      %v274 = vshll.u32 %v152, 16
      %v276 = vrot.slane %v274, 5
      %v277 = vor.u32 %v273, %v276
      %v278 = vrot.slane %v277, 4
      %v280 = vshll.u32 %v168, 16
      %v282 = vrot.slane %v280, 5
      %v283 = vsel %vm171, %v278, %v282
      %s284 = scalar_lea.vmem %s1, 32
      %v285 = vld [vmem:[%s284] sm:$0xf]
      %v286 = vld [vmem:[%s284 + $0x4] sm:$0xf]
      %v287 = vld [vmem:[%s284 + $0x8] sm:$0xf]
      %v288 = vld [vmem:[%s284 + $0xc] sm:$0xf]
      %v289 = vld [vmem:[%s284 + $0x10] sm:$0xf]
      %v290 = vld [vmem:[%s284 + $0x14] sm:$0xf]
      %v291 = vld [vmem:[%s284 + $0x18] sm:$0xf]
      %v292 = vld [vmem:[%s284 + $0x1c] sm:$0xf]
      %v293 = vunpack.c.l.b16 %v185
      %v294 = vunpack.c.l.b16 %v199
      %v295 = vunpack.c.l.b16 %v213
      %v296 = vunpack.c.l.b16 %v227
      %v297 = vunpack.c.l.b16 %v241
      %v298 = vunpack.c.l.b16 %v255
      %v299 = vunpack.c.l.b16 %v269
      %v300 = vunpack.c.l.b16 %v283
      %v301 = vpack.c.b16 %v294, %v293
      %v302 = vpack.c.b16 %v296, %v295
      %v303 = vpack.c.b16 %v298, %v297
      %v304 = vpack.c.b16 %v300, %v299
      %v313 = vunpack.c.l.b16 %v285
      %v314 = vunpack.c.l.b16 %v286
      %v315 = vunpack.c.l.b16 %v287
      %v316 = vunpack.c.l.b16 %v288
      %v317 = vunpack.c.l.b16 %v289
      %v318 = vunpack.c.l.b16 %v290
      %v319 = vunpack.c.l.b16 %v291
      %v320 = vunpack.c.l.b16 %v292
      %v321 = vpack.c.b16 %v314, %v313
      %v322 = vpack.c.b16 %v316, %v315
      %v323 = vpack.c.b16 %v318, %v317
      %v324 = vpack.c.b16 %v320, %v319
      %vm329 = vcmask 523264
      %v331 = vsel %vm329, %v301, 0
      %v334 = vsel %vm329, %v302, 0
      %v337 = vsel %vm329, %v303, 0
      %v340 = vsel %vm329, %v304, 0
      %342 = vmatpush.bf16.msra.mxu0 0
      %343 = vmatpush.bf16.msra.mxu0 0
      %344 = vmatpush.bf16.msra.mxu0 0
      %345 = vmatpush.bf16.msra.mxu0 0
      %346 = vmatpush.bf16.msra.mxu0 %v324
      %347 = vmatpush.bf16.msra.mxu0 %v323
      %348 = vmatpush.bf16.msra.mxu0 %v322
      %349 = vmatpush.bf16.msra.mxu0 %v321
      %350 = vmatmul.bf16.gmra.mxu0 %v331
      %v351 = vpop.f32.mrf.mxu0
      %v352 = vadd.f32 0.0, %v351
      %v353 = vpop.f32.mrf.mxu0
      %v354 = vadd.f32 0.0, %v353
      %355 = vmatmul.bf16.gmra.mxu0 %v334
      %v356 = vpop.f32.mrf.mxu0
      %v357 = vadd.f32 0.0, %v356
      %v358 = vpop.f32.mrf.mxu0
      %v359 = vadd.f32 0.0, %v358
      %360 = vmatmul.bf16.gmra.mxu0 %v337
      %v361 = vpop.f32.mrf.mxu0
      %v362 = vadd.f32 0.0, %v361
      %v363 = vpop.f32.mrf.mxu0
      %v364 = vadd.f32 0.0, %v363
      %365 = vmatmul.bf16.gmra.mxu0 %v340
      %v366 = vpop.f32.mrf.mxu0
      %v367 = vadd.f32 0.0, %v366
      %v368 = vpop.f32.mrf.mxu0
      %v369 = vadd.f32 0.0, %v368
      %370 = vdwg.mxu0
      %v379 = vunpack.c.l.b16 %v145
      %v380 = vunpack.c.l.b16 %v146
      %v381 = vunpack.c.l.b16 %v147
      %v382 = vunpack.c.l.b16 %v148
      %v383 = vunpack.c.l.b16 %v149
      %v384 = vunpack.c.l.b16 %v150
      %v385 = vunpack.c.l.b16 %v151
      %v386 = vunpack.c.l.b16 %v152
      %v387 = vpack.c.b16 %v380, %v379
      %v388 = vpack.c.b16 %v382, %v381
      %v389 = vpack.c.b16 %v384, %v383
      %v390 = vpack.c.b16 %v386, %v385
      %v399 = vunpack.c.l.b16 %v153
      %v400 = vunpack.c.l.b16 %v154
      %v401 = vunpack.c.l.b16 %v155
      %v402 = vunpack.c.l.b16 %v156
      %v403 = vunpack.c.l.b16 %v157
      %v404 = vunpack.c.l.b16 %v158
      %v405 = vunpack.c.l.b16 %v159
      %v406 = vunpack.c.l.b16 %v160
      %v407 = vpack.c.b16 %v400, %v399
      %v408 = vpack.c.b16 %v402, %v401
      %v409 = vpack.c.b16 %v404, %v403
      %v410 = vpack.c.b16 %v406, %v405
      %v416 = vsel %vm329, %v387, 0
      %v419 = vsel %vm329, %v388, 0
      %v422 = vsel %vm329, %v389, 0
      %v425 = vsel %vm329, %v390, 0
      %427 = vmatpush.bf16.msra.mxu0 0
      %428 = vmatpush.bf16.msra.mxu0 0
      %429 = vmatpush.bf16.msra.mxu0 0
      %430 = vmatpush.bf16.msra.mxu0 0
      %431 = vmatpush.bf16.msra.mxu0 %v410
      %432 = vmatpush.bf16.msra.mxu0 %v409
      %433 = vmatpush.bf16.msra.mxu0 %v408
      %434 = vmatpush.bf16.msra.mxu0 %v407
      %435 = vmatmul.bf16.gmra.mxu0 %v416
      %v436 = vpop.f32.mrf.mxu0
      %v437 = vadd.f32 %v352, %v436
      %v438 = vpop.f32.mrf.mxu0
      %v439 = vadd.f32 %v354, %v438
      %440 = vmatmul.bf16.gmra.mxu0 %v419
      %v441 = vpop.f32.mrf.mxu0
      %v442 = vadd.f32 %v357, %v441
      %v443 = vpop.f32.mrf.mxu0
      %v444 = vadd.f32 %v359, %v443
      %445 = vmatmul.bf16.gmra.mxu0 %v422
      %v446 = vpop.f32.mrf.mxu0
      %v447 = vadd.f32 %v362, %v446
      %v448 = vpop.f32.mrf.mxu0
      %v449 = vadd.f32 %v364, %v448
      %450 = vmatmul.bf16.gmra.mxu0 %v425
      %v451 = vpop.f32.mrf.mxu0
      %v452 = vadd.f32 %v367, %v451
      %v453 = vpop.f32.mrf.mxu0
      %v454 = vadd.f32 %v369, %v453
      %455 = vdwg.mxu0
      %s456 = scalar_lea.vmem %s138, 8
      %v457 = vld [vmem:[%s456] sm:$0xf]
      %v458 = vld [vmem:[%s456 + $0x8] sm:$0xf]
      %v459 = vld [vmem:[%s456 + $0x10] sm:$0xf]
      %v460 = vld [vmem:[%s456 + $0x18] sm:$0xf]
      %v461 = vld [vmem:[%s456 + $0x20] sm:$0xf]
      %v462 = vld [vmem:[%s456 + $0x28] sm:$0xf]
      %v463 = vld [vmem:[%s456 + $0x30] sm:$0xf]
      %v464 = vld [vmem:[%s456 + $0x38] sm:$0xf]
      %s465 = scalar_lea.vmem %s1, 64
      %v466 = vld [vmem:[%s465] sm:$0xf]
      %v467 = vld [vmem:[%s465 + $0x4] sm:$0xf]
      %v468 = vld [vmem:[%s465 + $0x8] sm:$0xf]
      %v469 = vld [vmem:[%s465 + $0xc] sm:$0xf]
      %v470 = vld [vmem:[%s465 + $0x10] sm:$0xf]
      %v471 = vld [vmem:[%s465 + $0x14] sm:$0xf]
      %v472 = vld [vmem:[%s465 + $0x18] sm:$0xf]
      %v473 = vld [vmem:[%s465 + $0x1c] sm:$0xf]
      %v482 = vunpack.c.l.b16 %v457
      %v483 = vunpack.c.l.b16 %v458
      %v484 = vunpack.c.l.b16 %v459
      %v485 = vunpack.c.l.b16 %v460
      %v486 = vunpack.c.l.b16 %v461
      %v487 = vunpack.c.l.b16 %v462
      %v488 = vunpack.c.l.b16 %v463
      %v489 = vunpack.c.l.b16 %v464
      %v490 = vpack.c.b16 %v483, %v482
      %v491 = vpack.c.b16 %v485, %v484
      %v492 = vpack.c.b16 %v487, %v486
      %v493 = vpack.c.b16 %v489, %v488
      %v502 = vunpack.c.l.b16 %v466
      %v503 = vunpack.c.l.b16 %v467
      %v504 = vunpack.c.l.b16 %v468
      %v505 = vunpack.c.l.b16 %v469
      %v506 = vunpack.c.l.b16 %v470
      %v507 = vunpack.c.l.b16 %v471
      %v508 = vunpack.c.l.b16 %v472
      %v509 = vunpack.c.l.b16 %v473
      %v510 = vpack.c.b16 %v503, %v502
      %v511 = vpack.c.b16 %v505, %v504
      %v512 = vpack.c.b16 %v507, %v506
      %v513 = vpack.c.b16 %v509, %v508
      %v519 = vsel %vm329, %v490, 0
      %v522 = vsel %vm329, %v491, 0
      %v525 = vsel %vm329, %v492, 0
      %v528 = vsel %vm329, %v493, 0
      %530 = vmatpush.bf16.msra.mxu0 0
      %531 = vmatpush.bf16.msra.mxu0 0
      %532 = vmatpush.bf16.msra.mxu0 0
      %533 = vmatpush.bf16.msra.mxu0 0
      %534 = vmatpush.bf16.msra.mxu0 %v513
      %535 = vmatpush.bf16.msra.mxu0 %v512
      %536 = vmatpush.bf16.msra.mxu0 %v511
      %537 = vmatpush.bf16.msra.mxu0 %v510
      %538 = vmatmul.bf16.gmra.mxu0 %v519
      %v539 = vpop.f32.mrf.mxu0
      %v540 = vadd.f32 0.0, %v539
      %v541 = vpop.f32.mrf.mxu0
      %v542 = vadd.f32 0.0, %v541
      %543 = vmatmul.bf16.gmra.mxu0 %v522
      %v544 = vpop.f32.mrf.mxu0
      %v545 = vadd.f32 0.0, %v544
      %v546 = vpop.f32.mrf.mxu0
      %v547 = vadd.f32 0.0, %v546
      %548 = vmatmul.bf16.gmra.mxu0 %v525
      %v549 = vpop.f32.mrf.mxu0
      %v550 = vadd.f32 0.0, %v549
      %v551 = vpop.f32.mrf.mxu0
      %v552 = vadd.f32 0.0, %v551
      %553 = vmatmul.bf16.gmra.mxu0 %v528
      %v554 = vpop.f32.mrf.mxu0
      %v555 = vadd.f32 0.0, %v554
      %v556 = vpop.f32.mrf.mxu0
      %v557 = vadd.f32 0.0, %v556
      %558 = vdwg.mxu0
      %v559 = vadd.f32 %v437, %v540
      %v560 = vadd.f32 %v439, %v542
      %v561 = vadd.f32 %v442, %v545
      %v562 = vadd.f32 %v444, %v547
      %v563 = vadd.f32 %v447, %v550
      %v564 = vadd.f32 %v449, %v552
      %v565 = vadd.f32 %v452, %v555
      %v566 = vadd.f32 %v454, %v557
      %v567 = vld [vmem:[%s456] sm:$0xf]
      %v568 = vld [vmem:[%s456 + $0x4] sm:$0x1]
      %v569 = vld [vmem:[%s456 + $0x8] sm:$0xf]
      %v570 = vld [vmem:[%s456 + $0xc] sm:$0x1]
      %v571 = vld [vmem:[%s456 + $0x10] sm:$0xf]
      %v572 = vld [vmem:[%s456 + $0x14] sm:$0x1]
      %v573 = vld [vmem:[%s456 + $0x18] sm:$0xf]
      %v574 = vld [vmem:[%s456 + $0x1c] sm:$0x1]
      %v575 = vld [vmem:[%s456 + $0x20] sm:$0xf]
      %v576 = vld [vmem:[%s456 + $0x24] sm:$0x1]
      %v577 = vld [vmem:[%s456 + $0x28] sm:$0xf]
      %v578 = vld [vmem:[%s456 + $0x2c] sm:$0x1]
      %v579 = vld [vmem:[%s456 + $0x30] sm:$0xf]
      %v580 = vld [vmem:[%s456 + $0x34] sm:$0x1]
      %v581 = vld [vmem:[%s456 + $0x38] sm:$0xf]
      %v582 = vld [vmem:[%s456 + $0x3c] sm:$0x1]
      %v584 = vshrl.u32 %v567, 16
      %v586 = vrot.slane %v584, 4
      %v587 = vshll.u32 %v567, 16
      %v589 = vrot.slane %v587, 5
      %v590 = vor.u32 %v586, %v589
      %v591 = vrot.slane %v590, 4
      %v593 = vshll.u32 %v568, 16
      %v595 = vrot.slane %v593, 5
      %v596 = vsel %vm171, %v591, %v595
      %v598 = vshrl.u32 %v569, 16
      %v600 = vrot.slane %v598, 4
      %v601 = vshll.u32 %v569, 16
      %v603 = vrot.slane %v601, 5
      %v604 = vor.u32 %v600, %v603
      %v605 = vrot.slane %v604, 4
      %v607 = vshll.u32 %v570, 16
      %v609 = vrot.slane %v607, 5
      %v610 = vsel %vm171, %v605, %v609
      %v612 = vshrl.u32 %v571, 16
      %v614 = vrot.slane %v612, 4
      %v615 = vshll.u32 %v571, 16
      %v617 = vrot.slane %v615, 5
      %v618 = vor.u32 %v614, %v617
      %v619 = vrot.slane %v618, 4
      %v621 = vshll.u32 %v572, 16
      %v623 = vrot.slane %v621, 5
      %v624 = vsel %vm171, %v619, %v623
      %v626 = vshrl.u32 %v573, 16
      %v628 = vrot.slane %v626, 4
      %v629 = vshll.u32 %v573, 16
      %v631 = vrot.slane %v629, 5
      %v632 = vor.u32 %v628, %v631
      %v633 = vrot.slane %v632, 4
      %v635 = vshll.u32 %v574, 16
      %v637 = vrot.slane %v635, 5
      %v638 = vsel %vm171, %v633, %v637
      %v640 = vshrl.u32 %v575, 16
      %v642 = vrot.slane %v640, 4
      %v643 = vshll.u32 %v575, 16
      %v645 = vrot.slane %v643, 5
      %v646 = vor.u32 %v642, %v645
      %v647 = vrot.slane %v646, 4
      %v649 = vshll.u32 %v576, 16
      %v651 = vrot.slane %v649, 5
      %v652 = vsel %vm171, %v647, %v651
      %v654 = vshrl.u32 %v577, 16
      %v656 = vrot.slane %v654, 4
      %v657 = vshll.u32 %v577, 16
      %v659 = vrot.slane %v657, 5
      %v660 = vor.u32 %v656, %v659
      %v661 = vrot.slane %v660, 4
      %v663 = vshll.u32 %v578, 16
      %v665 = vrot.slane %v663, 5
      %v666 = vsel %vm171, %v661, %v665
      %v668 = vshrl.u32 %v579, 16
      %v670 = vrot.slane %v668, 4
      %v671 = vshll.u32 %v579, 16
      %v673 = vrot.slane %v671, 5
      %v674 = vor.u32 %v670, %v673
      %v675 = vrot.slane %v674, 4
      %v677 = vshll.u32 %v580, 16
      %v679 = vrot.slane %v677, 5
      %v680 = vsel %vm171, %v675, %v679
      %v682 = vshrl.u32 %v581, 16
      %v684 = vrot.slane %v682, 4
      %v685 = vshll.u32 %v581, 16
      %v687 = vrot.slane %v685, 5
      %v688 = vor.u32 %v684, %v687
      %v689 = vrot.slane %v688, 4
      %v691 = vshll.u32 %v582, 16
      %v693 = vrot.slane %v691, 5
      %v694 = vsel %vm171, %v689, %v693
      %s695 = scalar_lea.vmem %s1, 96
      %v696 = vld [vmem:[%s695] sm:$0xf]
      %v697 = vld [vmem:[%s695 + $0x4] sm:$0xf]
      %v698 = vld [vmem:[%s695 + $0x8] sm:$0xf]
      %v699 = vld [vmem:[%s695 + $0xc] sm:$0xf]
      %v700 = vld [vmem:[%s695 + $0x10] sm:$0xf]
      %v701 = vld [vmem:[%s695 + $0x14] sm:$0xf]
      %v702 = vld [vmem:[%s695 + $0x18] sm:$0xf]
      %v703 = vld [vmem:[%s695 + $0x1c] sm:$0xf]
      %v704 = vunpack.c.l.b16 %v596
      %v705 = vunpack.c.l.b16 %v610
      %v706 = vunpack.c.l.b16 %v624
      %v707 = vunpack.c.l.b16 %v638
      %v708 = vunpack.c.l.b16 %v652
      %v709 = vunpack.c.l.b16 %v666
      %v710 = vunpack.c.l.b16 %v680
      %v711 = vunpack.c.l.b16 %v694
      %v712 = vpack.c.b16 %v705, %v704
      %v713 = vpack.c.b16 %v707, %v706
      %v714 = vpack.c.b16 %v709, %v708
      %v715 = vpack.c.b16 %v711, %v710
      %v724 = vunpack.c.l.b16 %v696
      %v725 = vunpack.c.l.b16 %v697
      %v726 = vunpack.c.l.b16 %v698
      %v727 = vunpack.c.l.b16 %v699
      %v728 = vunpack.c.l.b16 %v700
      %v729 = vunpack.c.l.b16 %v701
      %v730 = vunpack.c.l.b16 %v702
      %v731 = vunpack.c.l.b16 %v703
      %v732 = vpack.c.b16 %v725, %v724
      %v733 = vpack.c.b16 %v727, %v726
      %v734 = vpack.c.b16 %v729, %v728
      %v735 = vpack.c.b16 %v731, %v730
      %v741 = vsel %vm329, %v712, 0
      %v744 = vsel %vm329, %v713, 0
      %v747 = vsel %vm329, %v714, 0
      %v750 = vsel %vm329, %v715, 0
      %752 = vmatpush.bf16.msra.mxu0 0
      %753 = vmatpush.bf16.msra.mxu0 0
      %754 = vmatpush.bf16.msra.mxu0 0
      %755 = vmatpush.bf16.msra.mxu0 0
      %756 = vmatpush.bf16.msra.mxu0 %v735
      %757 = vmatpush.bf16.msra.mxu0 %v734
      %758 = vmatpush.bf16.msra.mxu0 %v733
      %759 = vmatpush.bf16.msra.mxu0 %v732
      %760 = vmatmul.bf16.gmra.mxu0 %v741
      %v761 = vpop.f32.mrf.mxu0
      %v762 = vadd.f32 0.0, %v761
      %v763 = vpop.f32.mrf.mxu0
      %v764 = vadd.f32 0.0, %v763
      %765 = vmatmul.bf16.gmra.mxu0 %v744
      %v766 = vpop.f32.mrf.mxu0
      %v767 = vadd.f32 0.0, %v766
      %v768 = vpop.f32.mrf.mxu0
      %v769 = vadd.f32 0.0, %v768
      %770 = vmatmul.bf16.gmra.mxu0 %v747
      %v771 = vpop.f32.mrf.mxu0
      %v772 = vadd.f32 0.0, %v771
      %v773 = vpop.f32.mrf.mxu0
      %v774 = vadd.f32 0.0, %v773
      %775 = vmatmul.bf16.gmra.mxu0 %v750
      %v776 = vpop.f32.mrf.mxu0
      %v777 = vadd.f32 0.0, %v776
      %v778 = vpop.f32.mrf.mxu0
      %v779 = vadd.f32 0.0, %v778
      %780 = vdwg.mxu0
      %v781 = vadd.f32 %v559, %v762
      %v782 = vadd.f32 %v560, %v764
      %v783 = vadd.f32 %v561, %v767
      %v784 = vadd.f32 %v562, %v769
      %v785 = vadd.f32 %v563, %v772
      %v786 = vadd.f32 %v564, %v774
      %v787 = vadd.f32 %v565, %v777
      %v788 = vadd.f32 %v566, %v779
      %vm789 = vcmp.ge.f32.partialorder %v781, 0.0
      %vm790 = vcmp.ge.f32.partialorder %v782, 0.0
      %vm791 = vcmp.ge.f32.partialorder %v783, 0.0
      %vm792 = vcmp.ge.f32.partialorder %v784, 0.0
      %vm793 = vcmp.ge.f32.partialorder %v785, 0.0
      %vm794 = vcmp.ge.f32.partialorder %v786, 0.0
      %vm795 = vcmp.ge.f32.partialorder %v787, 0.0
      %vm796 = vcmp.ge.f32.partialorder %v788, 0.0
      %v797 = vmul.f32 %v781, 0.2
      %v798 = vmul.f32 %v782, 0.2
      %v799 = vmul.f32 %v783, 0.2
      %v800 = vmul.f32 %v784, 0.2
      %v801 = vmul.f32 %v785, 0.2
      %v802 = vmul.f32 %v786, 0.2
      %v803 = vmul.f32 %v787, 0.2
      %v804 = vmul.f32 %v788, 0.2
      %v805 = vsel %vm789, %v781, %v797
      %v806 = vsel %vm790, %v782, %v798
      %v807 = vsel %vm791, %v783, %v799
      %v808 = vsel %vm792, %v784, %v800
      %v809 = vsel %vm793, %v785, %v801
      %v810 = vsel %vm794, %v786, %v802
      %v811 = vsel %vm795, %v787, %v803
      %v812 = vsel %vm796, %v788, %v804
      %v813 = vpack.c.bf16 %v805, %v805
      %v814 = vpack.c.bf16 %v806, %v806
      %v815 = vpack.c.bf16 %v807, %v807
      %v816 = vpack.c.bf16 %v808, %v808
      %v817 = vpack.c.bf16 %v809, %v809
      %v818 = vpack.c.bf16 %v810, %v810
      %v819 = vpack.c.bf16 %v811, %v811
      %v820 = vpack.c.bf16 %v812, %v812
      %vm821 = vcmask 125952
      %822 = vst.msk [vmem:[%s143] sm:$0xf] %vm821, %v813
      %823 = vst.msk [vmem:[%s143 + $0x4] sm:$0xf] %vm821, %v814
      %824 = vst.msk [vmem:[%s143 + $0x8] sm:$0xf] %vm821, %v815
      %825 = vst.msk [vmem:[%s143 + $0xc] sm:$0xf] %vm821, %v816
      %826 = vst.msk [vmem:[%s143 + $0x10] sm:$0xf] %vm821, %v817
      %827 = vst.msk [vmem:[%s143 + $0x14] sm:$0xf] %vm821, %v818
      %828 = vst.msk [vmem:[%s143 + $0x18] sm:$0xf] %vm821, %v819
      %829 = vst.msk [vmem:[%s143 + $0x1c] sm:$0xf] %vm821, %v820
      %p830 = scmp.lt.s32.totalorder %s13, 1
      %s831 = scalar_select %p830, %s13, 1
      %s832 = smul.addr %s831, 8
      %s833 = smul.addr %s832, 4
      %s834 = scalar_lea.vmem %s2, %s833
      // Predicated region
      $region29: #{pixel_discriminator_forward.2} parent=27 // pred_check
        %p835 = pneg %p78
      $region30: #{pixel_discriminator_forward.2} parent=27 // pred_check_branch
        %837 = sbr.rel (%p835) target = $region32
      $region31: #{pixel_discriminator_forward.2} parent=27 // pred_region
        _
      $region32: #{pixel_discriminator_forward.2} parent=27 // pred_fallthru
        _
    $region28: #{pixel_discriminator_forward.2} parent=5 // pred_fallthru
      _
    %p838 = scmp.le.s32.totalorder 2, %s8
    // Predicated region
    $region33: #{pixel_discriminator_forward.2} parent=5 // pred_check
      %p839 = pneg %p838
    $region34: #{pixel_discriminator_forward.2} parent=5 // pred_check_branch
      %841 = sbr.rel (%p839) target = $region36
    $region35: #{pixel_discriminator_forward.2} parent=5 // pred_region
      %s842 = ssub.s32 %s8, 2
      // Predicated region
      $region37: #{pixel_discriminator_forward.2} parent=35 // pred_check
        %p843 = pneg %p84
      $region38: #{pixel_discriminator_forward.2} parent=35 // pred_check_branch
        %845 = sbr.rel (%p843) target = $region40
      $region39: #{pixel_discriminator_forward.2} parent=35 // pred_region
        %p846 = scmp.lt.s32.totalorder %s14, 1
        %s847 = scalar_select %p846, %s14, 1
        %s848 = smul.addr %s847, 8
        %s849 = smul.addr %s848, 4
        %s850 = scalar_lea.vmem %s2, %s849
      $region40: #{pixel_discriminator_forward.2} parent=35 // pred_fallthru
        _
    $region36: #{pixel_discriminator_forward.2} parent=5 // pred_fallthru
      _
  $region6: #{pixel_discriminator_forward.2} parent=0 // loop_footer
    %s12 = sadd.s32 1, %s8
  $region7: #{pixel_discriminator_forward.2} parent=0 // loop_footer_branch
    %7 = sbr.rel target = $region3
  $region8: #{pixel_discriminator_forward.2} parent=0 // loop_exit
    _

// kernel: pixel_discriminator_forward.3
$region0: #{pixel_discriminator_forward.3}
  #allocation0 [shape = 'u32[]', space=smem, size = 0x4, offset = 0x4, fixed_abs, tag = 'smem constant byte address 0x4 - core index']
  #allocation1 [shape = 'u32[72,128]{1,0:T(1,128)}', space=vmem, size = 0x9000, scoped, tag = 'internal scratch']
  %s0 = inlined_call_operand.vmem [shape: bf16[2,5,5,64], index: 0, kind: input, shape index: {}]
  %s1 = inlined_call_operand.vmem [shape: bf16[4,64,8], index: 1, kind: input, shape index: {}]
  %s2 = inlined_call_operand.vmem [shape: bf16[4,8,8], index: 2, kind: input, shape index: {}]
  %s3 = inlined_call_operand.vmem [shape: f32[2,9,8], index: 3, kind: output, shape index: {}]
  %s4 = sld [smem:[#allocation0]]
  $region45: #{pixel_discriminator_forward.3} parent=0
    _
  %s6 = ssub.s32 1, %s4
  %s7 = scalar_select 0, %s6, %s4
  loop: start=0, step=1, limit=4
  $region2: #{pixel_discriminator_forward.3} parent=0 // loop_pre_header
    _
  $region3: #{pixel_discriminator_forward.3} parent=0 // loop_header
    %s9 = sphi 0, %s13
    %p10 = scmp.ge.s32.totalorder %s9, 4
    %s19 = sphi 0, %s21
    %s22 = sphi 0, %s19
    %s23 = sphi 0, %s22
    %s39 = sphi 0, %s23
    %s43 = sphi 0, %s43
    %s45 = sphi 0, %s43
    %s46 = sphi 0, %s45
    %s60 = sphi 0, %s46
    %s64 = sphi 0, %s64
    %s66 = sphi 0, %s64
    %s67 = sphi 0, %s66
    %s81 = sphi 0, %s67
    %s87 = sphi 0, %s89
    %s90 = sphi 0, %s87
    %s91 = sphi 0, %s90
    %s107 = sphi 0, %s91
  $region4: #{pixel_discriminator_forward.3} parent=0 // loop_header_branch
    %12 = sbr.rel (%p10) target = $region8
  $region5: #{pixel_discriminator_forward.3} parent=0 // loop_body
    %s14 = ssub.s32 %s9, 1
    %s15 = ssub.s32 %s9, 2
    %s16 = sadd.s32 %s9, 1
    %s17 = ssub.s32 %s9, %s16
    %p18 = scmp.eq.s32.totalorder %s17, 0
    %s20 = sadd.s32 %s19, 1
    %s21 = scalar_select %p18, %s19, %s20
    %p24 = pneg %p18
    %p25 = scmp.eq.s32.totalorder %s9, 1
    %p26 = por %p24, %p25
    %p27 = scmp.ne.s32.totalorder %s19, %s22
    %p28 = scmp.eq.s32.totalorder %s9, 0
    %p29 = por %p27, %p28
    %p30 = scmp.ne.s32.totalorder %s19, %s22
    %p31 = scmp.eq.s32.totalorder %s14, 1
    %p32 = por %p30, %p31
    %p33 = scmp.ne.s32.totalorder %s22, %s23
    %p34 = scmp.eq.s32.totalorder %s14, 0
    %p35 = por %p33, %p34
    %p36 = scmp.ne.s32.totalorder %s22, %s23
    %p37 = scmp.eq.s32.totalorder %s15, 1
    %p38 = por %p36, %p37
    %p40 = scmp.ne.s32.totalorder %s23, %s39
    %p41 = scmp.eq.s32.totalorder %s15, 0
    %p42 = por %p40, %p41
    %s44 = sadd.s32 %s43, 1
    %p47 = scmp.eq.s32.totalorder %s9, 1
    %p48 = scmp.ne.s32.totalorder %s43, %s45
    %p49 = scmp.eq.s32.totalorder %s9, 0
    %p50 = por %p48, %p49
    %p51 = scmp.ne.s32.totalorder %s43, %s45
    %p52 = scmp.eq.s32.totalorder %s14, 1
    %p53 = por %p51, %p52
    %p54 = scmp.ne.s32.totalorder %s45, %s46
    %p55 = scmp.eq.s32.totalorder %s14, 0
    %p56 = por %p54, %p55
    %p57 = scmp.ne.s32.totalorder %s45, %s46
    %p58 = scmp.eq.s32.totalorder %s15, 1
    %p59 = por %p57, %p58
    %p61 = scmp.ne.s32.totalorder %s46, %s60
    %p62 = scmp.eq.s32.totalorder %s15, 0
    %p63 = por %p61, %p62
    %s65 = sadd.s32 %s64, 1
    %p68 = scmp.eq.s32.totalorder %s9, 1
    %p69 = scmp.ne.s32.totalorder %s64, %s66
    %p70 = scmp.eq.s32.totalorder %s9, 0
    %p71 = por %p69, %p70
    %p72 = scmp.ne.s32.totalorder %s64, %s66
    %p73 = scmp.eq.s32.totalorder %s14, 1
    %p74 = por %p72, %p73
    %p75 = scmp.ne.s32.totalorder %s66, %s67
    %p76 = scmp.eq.s32.totalorder %s14, 0
    %p77 = por %p75, %p76
    %p78 = scmp.ne.s32.totalorder %s66, %s67
    %p79 = scmp.eq.s32.totalorder %s15, 1
    %p80 = por %p78, %p79
    %p82 = scmp.ne.s32.totalorder %s67, %s81
    %p83 = scmp.eq.s32.totalorder %s15, 0
    %p84 = por %p82, %p83
    %s85 = ssub.s32 %s9, %s16
    %p86 = scmp.eq.s32.totalorder %s85, 0
    %s88 = sadd.s32 %s87, 1
    %s89 = scalar_select %p86, %s87, %s88
    %p92 = pneg %p86
    %p93 = scmp.eq.s32.totalorder %s9, 1
    %p94 = por %p92, %p93
    %p95 = scmp.ne.s32.totalorder %s87, %s90
    %p96 = scmp.eq.s32.totalorder %s9, 0
    %p97 = por %p95, %p96
    %p98 = scmp.ne.s32.totalorder %s87, %s90
    %p99 = scmp.eq.s32.totalorder %s14, 1
    %p100 = por %p98, %p99
    %p101 = scmp.ne.s32.totalorder %s90, %s91
    %p102 = scmp.eq.s32.totalorder %s14, 0
    %p103 = por %p101, %p102
    %p104 = scmp.ne.s32.totalorder %s90, %s91
    %p105 = scmp.eq.s32.totalorder %s15, 1
    %p106 = por %p104, %p105
    %p108 = scmp.ne.s32.totalorder %s91, %s107
    %p109 = scmp.eq.s32.totalorder %s15, 0
    %p110 = por %p108, %p109
    %p111 = scmp.le.s32.totalorder 1, %s9
    %p112 = scmp.lt.s32.totalorder %s9, 3
    %p113 = pnand %p111, %p112
    %p114 = pneg %p113
    // Predicated region
    $region9: #{pixel_discriminator_forward.3} parent=5 // pred_check
      _
    $region10: #{pixel_discriminator_forward.3} parent=5 // pred_check_branch
      %116 = sbr.rel (%p113) target = $region12
    $region11: #{pixel_discriminator_forward.3} parent=5 // pred_region
      %s117 = ssub.s32 %s9, 1
      // Predicated region
      $region13: #{pixel_discriminator_forward.3} parent=11 // pred_check
        %p118 = pneg %p56
      $region14: #{pixel_discriminator_forward.3} parent=11 // pred_check_branch
        %120 = sbr.rel (%p118) target = $region16
      $region15: #{pixel_discriminator_forward.3} parent=11 // pred_region
        _
      $region16: #{pixel_discriminator_forward.3} parent=11 // pred_fallthru
        _
      // Predicated region
      $region17: #{pixel_discriminator_forward.3} parent=11 // pred_check
        %p121 = pneg %p77
      $region18: #{pixel_discriminator_forward.3} parent=11 // pred_check_branch
        %123 = sbr.rel (%p121) target = $region20
      $region19: #{pixel_discriminator_forward.3} parent=11 // pred_region
        _
      $region20: #{pixel_discriminator_forward.3} parent=11 // pred_fallthru
        _
    $region12: #{pixel_discriminator_forward.3} parent=5 // pred_fallthru
      _
    %p124 = scmp.lt.s32.totalorder %s9, 2
    // Predicated region
    $region21: #{pixel_discriminator_forward.3} parent=5 // pred_check
      %p125 = pneg %p124
    $region22: #{pixel_discriminator_forward.3} parent=5 // pred_check_branch
      %127 = sbr.rel (%p125) target = $region24
    $region23: #{pixel_discriminator_forward.3} parent=5 // pred_region
      // Predicated region
      $region25: #{pixel_discriminator_forward.3} parent=23 // pred_check
        %p128 = pneg %p29
      $region26: #{pixel_discriminator_forward.3} parent=23 // pred_check_branch
        %130 = sbr.rel (%p128) target = $region28
      $region27: #{pixel_discriminator_forward.3} parent=23 // pred_region
        %p131 = scmp.lt.s32.totalorder %s9, 1
        %s132 = scalar_select %p131, %s9, 1
        %s133 = smul.addr %s132, 5
        %s134 = smul.addr %s133, 4
        %s135 = scalar_lea.vmem %s0, %s134
      $region28: #{pixel_discriminator_forward.3} parent=23 // pred_fallthru
        _
    $region24: #{pixel_discriminator_forward.3} parent=5 // pred_fallthru
      _
    %p136 = scmp.le.s32.totalorder 1, %s9
    %p137 = scmp.lt.s32.totalorder %s9, 3
    %p138 = pnand %p136, %p137
    %p139 = pneg %p138
    // Predicated region
    $region29: #{pixel_discriminator_forward.3} parent=5 // pred_check
      _
    $region30: #{pixel_discriminator_forward.3} parent=5 // pred_check_branch
      %141 = sbr.rel (%p138) target = $region32
    $region31: #{pixel_discriminator_forward.3} parent=5 // pred_region
      %s142 = ssub.s32 %s9, 1
      %p143 = scmp.lt.s32.totalorder %s14, 1
      %s144 = scalar_select %p143, %s14, 1
      %s145 = smul.addr %s144, 5
      %s146 = smul.addr %s145, 4
      %s147 = scalar_lea.vmem %s0, %s146
      %p148 = pneg %p35
      %p149 = pneg %p32
      %p150 = pneg %p56
      %p151 = pneg %p53
      %p152 = pneg %p77
      %p153 = pneg %p74
      %p154 = pneg %p103
      %p155 = pneg %p100
      %p156 = scmp.lt.s32.totalorder %s14, 1
      %s157 = scalar_select %p156, %s14, 1
      %s158 = smul.addr %s157, 2
      %s159 = smul.addr %s158, 8
      %s160 = scalar_lea.vmem %s3, %s159
      %p161 = scmp.lt.s32.totalorder %s14, 1
      %s162 = scalar_select %p161, %s14, 1
      %s163 = smul.addr %s162, 5
      %s164 = smul.addr %s163, 4
      %s165 = scalar_lea.vmem %s0, %s164
      %p166 = scmp.lt.s32.totalorder %s14, 1
      %s167 = scalar_select %p166, %s14, 1
      %s168 = smul.addr %s167, 2
      %s169 = smul.addr %s168, 8
      %s170 = scalar_lea.vmem %s3, %s169
      %v172 = vld [vmem:[%s165] sm:$0x3]
      %v173 = vld [vmem:[%s165 + $0x4] sm:$0x3]
      %v174 = vld [vmem:[%s165 + $0x8] sm:$0x3]
      %v175 = vld [vmem:[%s165 + $0xc] sm:$0x3]
      %v176 = vld [vmem:[%s1] sm:$0xf]
      %v177 = vld [vmem:[%s1 + $0x4] sm:$0xf]
      %v178 = vld [vmem:[%s1 + $0x8] sm:$0xf]
      %v179 = vld [vmem:[%s1 + $0xc] sm:$0xf]
      %v180 = vld [vmem:[%s1 + $0x10] sm:$0xf]
      %v181 = vld [vmem:[%s1 + $0x14] sm:$0xf]
      %v182 = vld [vmem:[%s1 + $0x18] sm:$0xf]
      %v183 = vld [vmem:[%s1 + $0x1c] sm:$0xf]
      %v184 = vld [vmem:[%s165] sm:$0x7]
      %v185 = vld [vmem:[%s165 + $0x4] sm:$0x7]
      %v186 = vld [vmem:[%s165 + $0x8] sm:$0x7]
      %v187 = vld [vmem:[%s165 + $0xc] sm:$0x7]
      %v192 = vrot.slane %v184, 2
      %v193 = vrot.slane %v185, 2
      %v194 = vrot.slane %v186, 2
      %v195 = vrot.slane %v187, 2
      %vm196 = vcmask 1041408
      %v199 = vsel %vm196, %v184, %v192
      %vm200 = vcmask 1043458
      %v201 = vsel %vm200, %v184, %v192
      %v203 = vrot.slane %v201, 2
      %v206 = vsel %vm196, %v185, %v193
      %v207 = vsel %vm200, %v185, %v193
      %v209 = vrot.slane %v207, 2
      %v212 = vsel %vm196, %v186, %v194
      %v213 = vsel %vm200, %v186, %v194
      %v215 = vrot.slane %v213, 2
      %v218 = vsel %vm196, %v187, %v195
      %v219 = vsel %vm200, %v187, %v195
      %v221 = vrot.slane %v219, 2
      %vm222 = vsmask.f32 1280
      %vm223 = vsmask.f32 3336
      %vm224 = vmor %vm222, %vm223
      %vm225 = vsmask.f32 5392
      %vm226 = vmor %vm224, %vm225
      %vm227 = vsmask.f32 7448
      %vm228 = vmor %vm226, %vm227
      %v229 = vshrl.u32 %v199, 16
      %v231 = vrot.slane %v229, 6
      %v232 = vshll.u32 %v199, 16
      %v234 = vrot.slane %v232, 7
      %v235 = vor.u32 %v231, %v234
      %v236 = vrot.slane %v235, 2
      %v238 = vshll.u32 %v203, 16
      %v240 = vrot.slane %v238, 7
      %v241 = vsel %vm228, %v236, %v240
      %v242 = vshrl.u32 %v206, 16
      %v244 = vrot.slane %v242, 6
      %v245 = vshll.u32 %v206, 16
      %v247 = vrot.slane %v245, 7
      %v248 = vor.u32 %v244, %v247
      %v249 = vrot.slane %v248, 2
      %v251 = vshll.u32 %v209, 16
      %v253 = vrot.slane %v251, 7
      %v254 = vsel %vm228, %v249, %v253
      %v255 = vshrl.u32 %v212, 16
      %v257 = vrot.slane %v255, 6
      %v258 = vshll.u32 %v212, 16
      %v260 = vrot.slane %v258, 7
      %v261 = vor.u32 %v257, %v260
      %v262 = vrot.slane %v261, 2
      %v264 = vshll.u32 %v215, 16
      %v266 = vrot.slane %v264, 7
      %v267 = vsel %vm228, %v262, %v266
      %v268 = vshrl.u32 %v218, 16
      %v270 = vrot.slane %v268, 6
      %v271 = vshll.u32 %v218, 16
      %v273 = vrot.slane %v271, 7
      %v274 = vor.u32 %v270, %v273
      %v275 = vrot.slane %v274, 2
      %v277 = vshll.u32 %v221, 16
      %v279 = vrot.slane %v277, 7
      %v280 = vsel %vm228, %v275, %v279
      %s281 = scalar_lea.vmem %s1, 32
      %v282 = vld [vmem:[%s281] sm:$0xf]
      %v283 = vld [vmem:[%s281 + $0x4] sm:$0xf]
      %v284 = vld [vmem:[%s281 + $0x8] sm:$0xf]
      %v285 = vld [vmem:[%s281 + $0xc] sm:$0xf]
      %v286 = vld [vmem:[%s281 + $0x10] sm:$0xf]
      %v287 = vld [vmem:[%s281 + $0x14] sm:$0xf]
      %v288 = vld [vmem:[%s281 + $0x18] sm:$0xf]
      %v289 = vld [vmem:[%s281 + $0x1c] sm:$0xf]
      %291 = vst [vmem:[#allocation1] ss:$4 sm:$0xff] %v241
      %s293 = scalar_lea.vmem [#allocation1], 1
      %294 = vst [vmem:[%s293] ss:$4 sm:$0xff] %v254
      %s296 = scalar_lea.vmem [#allocation1], 2
      %297 = vst [vmem:[%s296] ss:$4 sm:$0xff] %v267
      %s299 = scalar_lea.vmem [#allocation1], 3
      %300 = vst [vmem:[%s299] ss:$4 sm:$0xff] %v280
      %v301 = vld.sshfl [vmem:[#allocation1] sm:$0xff pattern:$0x73625140]
      %v310 = vunpack.c.l.b16 %v282
      %v311 = vunpack.c.l.b16 %v283
      %v312 = vunpack.c.l.b16 %v284
      %v313 = vunpack.c.l.b16 %v285
      %v314 = vunpack.c.l.b16 %v286
      %v315 = vunpack.c.l.b16 %v287
      %v316 = vunpack.c.l.b16 %v288
      %v317 = vunpack.c.l.b16 %v289
      %v318 = vpack.c.b16 %v311, %v310
      %v319 = vpack.c.b16 %v313, %v312
      %v320 = vpack.c.b16 %v315, %v314
      %v321 = vpack.c.b16 %v317, %v316
      %vm326 = vcmask 523264
      %v327 = vsel %vm326, %v301, 0
      %329 = vmatpush.bf16.msra.mxu0 0
      %330 = vmatpush.bf16.msra.mxu0 0
      %331 = vmatpush.bf16.msra.mxu0 0
      %332 = vmatpush.bf16.msra.mxu0 0
      %333 = vmatpush.bf16.msra.mxu0 %v321
      %334 = vmatpush.bf16.msra.mxu0 %v320
      %335 = vmatpush.bf16.msra.mxu0 %v319
      %336 = vmatpush.bf16.msra.mxu0 %v318
      %337 = vmatmul.bf16.gmra.mxu0 %v327
      %v338 = vpop.f32.mrf.mxu0
      %v339 = vadd.f32 0.0, %v338
      %v340 = vpop.f32.mrf.mxu0
      %v341 = vadd.f32 0.0, %v340
      %342 = vdwg.mxu0
      %344 = vst [vmem:[#allocation1] ss:$4 sm:$0xff] %v172
      %s346 = scalar_lea.vmem [#allocation1], 1
      %347 = vst [vmem:[%s346] ss:$4 sm:$0xff] %v173
      %s349 = scalar_lea.vmem [#allocation1], 2
      %350 = vst [vmem:[%s349] ss:$4 sm:$0xff] %v174
      %s352 = scalar_lea.vmem [#allocation1], 3
      %353 = vst [vmem:[%s352] ss:$4 sm:$0xff] %v175
      %v354 = vld.sshfl [vmem:[#allocation1] sm:$0xff pattern:$0x73625140]
      %v363 = vunpack.c.l.b16 %v176
      %v364 = vunpack.c.l.b16 %v177
      %v365 = vunpack.c.l.b16 %v178
      %v366 = vunpack.c.l.b16 %v179
      %v367 = vunpack.c.l.b16 %v180
      %v368 = vunpack.c.l.b16 %v181
      %v369 = vunpack.c.l.b16 %v182
      %v370 = vunpack.c.l.b16 %v183
      %v371 = vpack.c.b16 %v364, %v363
      %v372 = vpack.c.b16 %v366, %v365
      %v373 = vpack.c.b16 %v368, %v367
      %v374 = vpack.c.b16 %v370, %v369
      %v379 = vsel %vm326, %v354, 0
      %381 = vmatpush.bf16.msra.mxu0 0
      %382 = vmatpush.bf16.msra.mxu0 0
      %383 = vmatpush.bf16.msra.mxu0 0
      %384 = vmatpush.bf16.msra.mxu0 0
      %385 = vmatpush.bf16.msra.mxu0 %v374
      %386 = vmatpush.bf16.msra.mxu0 %v373
      %387 = vmatpush.bf16.msra.mxu0 %v372
      %388 = vmatpush.bf16.msra.mxu0 %v371
      %389 = vmatmul.bf16.gmra.mxu0 %v379
      %v390 = vpop.f32.mrf.mxu0
      %v391 = vadd.f32 %v339, %v390
      %v392 = vpop.f32.mrf.mxu0
      %v393 = vadd.f32 %v341, %v392
      %394 = vdwg.mxu0
      %s395 = scalar_lea.vmem %s165, 4
      %v396 = vld [vmem:[%s395] sm:$0x3]
      %v397 = vld [vmem:[%s395 + $0x4] sm:$0x3]
      %v398 = vld [vmem:[%s395 + $0x8] sm:$0x3]
      %v399 = vld [vmem:[%s395 + $0xc] sm:$0x3]
      %s400 = scalar_lea.vmem %s1, 64
      %v401 = vld [vmem:[%s400] sm:$0xf]
      %v402 = vld [vmem:[%s400 + $0x4] sm:$0xf]
      %v403 = vld [vmem:[%s400 + $0x8] sm:$0xf]
      %v404 = vld [vmem:[%s400 + $0xc] sm:$0xf]
      %v405 = vld [vmem:[%s400 + $0x10] sm:$0xf]
      %v406 = vld [vmem:[%s400 + $0x14] sm:$0xf]
      %v407 = vld [vmem:[%s400 + $0x18] sm:$0xf]
      %v408 = vld [vmem:[%s400 + $0x1c] sm:$0xf]
      %410 = vst [vmem:[#allocation1] ss:$4 sm:$0xff] %v396
      %s412 = scalar_lea.vmem [#allocation1], 1
      %413 = vst [vmem:[%s412] ss:$4 sm:$0xff] %v397
      %s415 = scalar_lea.vmem [#allocation1], 2
      %416 = vst [vmem:[%s415] ss:$4 sm:$0xff] %v398
      %s418 = scalar_lea.vmem [#allocation1], 3
      %419 = vst [vmem:[%s418] ss:$4 sm:$0xff] %v399
      %v420 = vld.sshfl [vmem:[#allocation1] sm:$0xff pattern:$0x73625140]
      %v429 = vunpack.c.l.b16 %v401
      %v430 = vunpack.c.l.b16 %v402
      %v431 = vunpack.c.l.b16 %v403
      %v432 = vunpack.c.l.b16 %v404
      %v433 = vunpack.c.l.b16 %v405
      %v434 = vunpack.c.l.b16 %v406
      %v435 = vunpack.c.l.b16 %v407
      %v436 = vunpack.c.l.b16 %v408
      %v437 = vpack.c.b16 %v430, %v429
      %v438 = vpack.c.b16 %v432, %v431
      %v439 = vpack.c.b16 %v434, %v433
      %v440 = vpack.c.b16 %v436, %v435
      %v445 = vsel %vm326, %v420, 0
      %447 = vmatpush.bf16.msra.mxu0 0
      %448 = vmatpush.bf16.msra.mxu0 0
      %449 = vmatpush.bf16.msra.mxu0 0
      %450 = vmatpush.bf16.msra.mxu0 0
      %451 = vmatpush.bf16.msra.mxu0 %v440
      %452 = vmatpush.bf16.msra.mxu0 %v439
      %453 = vmatpush.bf16.msra.mxu0 %v438
      %454 = vmatpush.bf16.msra.mxu0 %v437
      %455 = vmatmul.bf16.gmra.mxu0 %v445
      %v456 = vpop.f32.mrf.mxu0
      %v457 = vadd.f32 0.0, %v456
      %v458 = vpop.f32.mrf.mxu0
      %v459 = vadd.f32 0.0, %v458
      %460 = vdwg.mxu0
      %v461 = vadd.f32 %v391, %v457
      %v462 = vadd.f32 %v393, %v459
      %v463 = vld [vmem:[%s395] sm:$0x7]
      %v464 = vld [vmem:[%s395 + $0x4] sm:$0x7]
      %v465 = vld [vmem:[%s395 + $0x8] sm:$0x7]
      %v466 = vld [vmem:[%s395 + $0xc] sm:$0x7]
      %v471 = vrot.slane %v463, 2
      %v472 = vrot.slane %v464, 2
      %v473 = vrot.slane %v465, 2
      %v474 = vrot.slane %v466, 2
      %v477 = vsel %vm196, %v463, %v471
      %v478 = vsel %vm200, %v463, %v471
      %v480 = vrot.slane %v478, 2
      %v483 = vsel %vm196, %v464, %v472
      %v484 = vsel %vm200, %v464, %v472
      %v486 = vrot.slane %v484, 2
      %v489 = vsel %vm196, %v465, %v473
      %v490 = vsel %vm200, %v465, %v473
      %v492 = vrot.slane %v490, 2
      %v495 = vsel %vm196, %v466, %v474
      %v496 = vsel %vm200, %v466, %v474
      %v498 = vrot.slane %v496, 2
      %v499 = vshrl.u32 %v477, 16
      %v501 = vrot.slane %v499, 6
      %v502 = vshll.u32 %v477, 16
      %v504 = vrot.slane %v502, 7
      %v505 = vor.u32 %v501, %v504
      %v506 = vrot.slane %v505, 2
      %v508 = vshll.u32 %v480, 16
      %v510 = vrot.slane %v508, 7
      %v511 = vsel %vm228, %v506, %v510
      %v512 = vshrl.u32 %v483, 16
      %v514 = vrot.slane %v512, 6
      %v515 = vshll.u32 %v483, 16
      %v517 = vrot.slane %v515, 7
      %v518 = vor.u32 %v514, %v517
      %v519 = vrot.slane %v518, 2
      %v521 = vshll.u32 %v486, 16
      %v523 = vrot.slane %v521, 7
      %v524 = vsel %vm228, %v519, %v523
      %v525 = vshrl.u32 %v489, 16
      %v527 = vrot.slane %v525, 6
      %v528 = vshll.u32 %v489, 16
      %v530 = vrot.slane %v528, 7
      %v531 = vor.u32 %v527, %v530
      %v532 = vrot.slane %v531, 2
      %v534 = vshll.u32 %v492, 16
      %v536 = vrot.slane %v534, 7
      %v537 = vsel %vm228, %v532, %v536
      %v538 = vshrl.u32 %v495, 16
      %v540 = vrot.slane %v538, 6
      %v541 = vshll.u32 %v495, 16
      %v543 = vrot.slane %v541, 7
      %v544 = vor.u32 %v540, %v543
      %v545 = vrot.slane %v544, 2
      %v547 = vshll.u32 %v498, 16
      %v549 = vrot.slane %v547, 7
      %v550 = vsel %vm228, %v545, %v549
      %s551 = scalar_lea.vmem %s1, 96
      %v552 = vld [vmem:[%s551] sm:$0xf]
      %v553 = vld [vmem:[%s551 + $0x4] sm:$0xf]
      %v554 = vld [vmem:[%s551 + $0x8] sm:$0xf]
      %v555 = vld [vmem:[%s551 + $0xc] sm:$0xf]
      %v556 = vld [vmem:[%s551 + $0x10] sm:$0xf]
      %v557 = vld [vmem:[%s551 + $0x14] sm:$0xf]
      %v558 = vld [vmem:[%s551 + $0x18] sm:$0xf]
      %v559 = vld [vmem:[%s551 + $0x1c] sm:$0xf]
      %561 = vst [vmem:[#allocation1] ss:$4 sm:$0xff] %v511
      %s563 = scalar_lea.vmem [#allocation1], 1
      %564 = vst [vmem:[%s563] ss:$4 sm:$0xff] %v524
      %s566 = scalar_lea.vmem [#allocation1], 2
      %567 = vst [vmem:[%s566] ss:$4 sm:$0xff] %v537
      %s569 = scalar_lea.vmem [#allocation1], 3
      %570 = vst [vmem:[%s569] ss:$4 sm:$0xff] %v550
      %v571 = vld.sshfl [vmem:[#allocation1] sm:$0xff pattern:$0x73625140]
      %v580 = vunpack.c.l.b16 %v552
      %v581 = vunpack.c.l.b16 %v553
      %v582 = vunpack.c.l.b16 %v554
      %v583 = vunpack.c.l.b16 %v555
      %v584 = vunpack.c.l.b16 %v556
      %v585 = vunpack.c.l.b16 %v557
      %v586 = vunpack.c.l.b16 %v558
      %v587 = vunpack.c.l.b16 %v559
      %v588 = vpack.c.b16 %v581, %v580
      %v589 = vpack.c.b16 %v583, %v582
      %v590 = vpack.c.b16 %v585, %v584
      %v591 = vpack.c.b16 %v587, %v586
      %v596 = vsel %vm326, %v571, 0
      %598 = vmatpush.bf16.msra.mxu0 0
      %599 = vmatpush.bf16.msra.mxu0 0
      %600 = vmatpush.bf16.msra.mxu0 0
      %601 = vmatpush.bf16.msra.mxu0 0
      %602 = vmatpush.bf16.msra.mxu0 %v591
      %603 = vmatpush.bf16.msra.mxu0 %v590
      %604 = vmatpush.bf16.msra.mxu0 %v589
      %605 = vmatpush.bf16.msra.mxu0 %v588
      %606 = vmatmul.bf16.gmra.mxu0 %v596
      %v607 = vpop.f32.mrf.mxu0
      %v608 = vadd.f32 0.0, %v607
      %v609 = vpop.f32.mrf.mxu0
      %v610 = vadd.f32 0.0, %v609
      %611 = vdwg.mxu0
      %v612 = vadd.f32 %v461, %v608
      %v613 = vadd.f32 %v462, %v610
      %vm614 = vcmp.ge.f32.partialorder %v612, 0.0
      %vm615 = vcmp.ge.f32.partialorder %v613, 0.0
      %v616 = vmul.f32 %v612, 0.2
      %v617 = vmul.f32 %v613, 0.2
      %v618 = vsel %vm614, %v612, %v616
      %v619 = vsel %vm615, %v613, %v617
      %v622 = vrot.slane %v618, 4
      %v623 = vrot.slane %v619, 4
      %v626 = vpack.c.bf16 %v618, %v618
      %v627 = vpack.c.bf16 %v622, %v622
      %v628 = vpack.c.bf16 %v619, %v619
      %v629 = vpack.c.bf16 %v623, %v623
      %v633 = vrot.slane %v626, 3
      %v634 = vrot.slane %v627, 3
      %v635 = vrot.slane %v628, 3
      %vm636 = vcmask 1040384
      %v639 = vsel %vm636, %v626, %v633
      %vm641 = vcmask 1041409
      %v642 = vsel %vm641, %v626, %v633
      %v644 = vrot.slane %v642, 1
      %v647 = vsel %vm636, %v627, %v634
      %v649 = vsel %vm641, %v627, %v634
      %v651 = vrot.slane %v649, 1
      %v654 = vsel %vm636, %v628, %v635
      %v656 = vsel %vm641, %v628, %v635
      %v658 = vrot.slane %v656, 1
      %v659 = vunpack.i.l.s16 %v639
      %v660 = vunpack.i.h.s16 %v639
      %v661 = vunpack.i.l.s16 %v644
      %v662 = vunpack.i.l.s16 %v647
      %v663 = vunpack.i.h.s16 %v647
      %v664 = vunpack.i.l.s16 %v651
      %v665 = vunpack.i.l.s16 %v654
      %v666 = vunpack.i.h.s16 %v654
      %v667 = vunpack.i.l.s16 %v658
      %v668 = vld [vmem:[%s2] sm:$0xf]
      %v669 = vunpack.i.h.s16 %v644
      %v670 = vunpack.i.h.s16 %v651
      %v671 = vunpack.i.h.s16 %v658
      %s672 = scalar_lea.vmem %s2, 4
      %v673 = vld [vmem:[%s672] sm:$0xf]
      %v674 = vpack.i.b16 %v661, %v660
      %v675 = vpack.i.b16 %v663, %v669
      %v676 = vpack.i.b16 %v670, %v664
      %v677 = vpack.i.b16 %v667, %v666
      %680 = vst [vmem:[#allocation1] ss:$9 sm:$0xff] %v674
      %s682 = scalar_lea.vmem [#allocation1], 1
      %683 = vst [vmem:[%s682] ss:$9 sm:$0xff] %v675
      %s685 = scalar_lea.vmem [#allocation1], 2
      %686 = vst [vmem:[%s685] ss:$9 sm:$0xff] %v676
      %s688 = scalar_lea.vmem [#allocation1], 3
      %689 = vst [vmem:[%s688] ss:$9 sm:$0xff] %v677
      %s691 = scalar_lea.vmem [#allocation1], 4
      %692 = vst [vmem:[%s691] ss:$9 sm:$0xff] %v671
      %v693 = vld [vmem:[#allocation1] sm:$0xff]
      %vm694 = vcmask 64512
      %v695 = vsel %vm694, %v693, 0
      %vm697 = vcmask 1043456
      %v699 = vsel %vm697, %v673, 0
      %701 = vmatpush.bf16.msra.mxu0 0
      %702 = vmatpush.bf16.msra.mxu0 0
      %703 = vmatpush.bf16.msra.mxu0 0
      %704 = vmatpush.bf16.msra.mxu0 0
      %705 = vmatpush.bf16.msra.mxu0 0
      %706 = vmatpush.bf16.msra.mxu0 0
      %707 = vmatpush.bf16.msra.mxu0 0
      %708 = vmatpush.bf16.msra.mxu0 %v699
      %709 = vmatmul.bf16.gmra.mxu0 %v695
      %v710 = vpop.f32.mrf.mxu0
      %v711 = vadd.f32 0.0, %v710
      %v712 = vpop.f32.mrf.mxu0
      %v713 = vadd.f32 0.0, %v712
      %714 = vdwg.mxu0
      %v715 = vpack.i.b16 %v660, %v659
      %v716 = vpack.i.b16 %v662, %v661
      %v717 = vpack.i.b16 %v664, %v663
      %v718 = vpack.i.b16 %v666, %v665
      %721 = vst [vmem:[#allocation1] ss:$9 sm:$0xff] %v715
      %s723 = scalar_lea.vmem [#allocation1], 1
      %724 = vst [vmem:[%s723] ss:$9 sm:$0xff] %v716
      %s726 = scalar_lea.vmem [#allocation1], 2
      %727 = vst [vmem:[%s726] ss:$9 sm:$0xff] %v717
      %s729 = scalar_lea.vmem [#allocation1], 3
      %730 = vst [vmem:[%s729] ss:$9 sm:$0xff] %v718
      %s732 = scalar_lea.vmem [#allocation1], 4
      %733 = vst [vmem:[%s732] ss:$9 sm:$0xff] %v667
      %v734 = vld [vmem:[#allocation1] sm:$0xff]
      %v735 = vsel %vm694, %v734, 0
      %v738 = vsel %vm697, %v668, 0
      %740 = vmatpush.bf16.msra.mxu0 0
      %741 = vmatpush.bf16.msra.mxu0 0
      %742 = vmatpush.bf16.msra.mxu0 0
      %743 = vmatpush.bf16.msra.mxu0 0
      %744 = vmatpush.bf16.msra.mxu0 0
      %745 = vmatpush.bf16.msra.mxu0 0
      %746 = vmatpush.bf16.msra.mxu0 0
      %747 = vmatpush.bf16.msra.mxu0 %v738
      %748 = vmatmul.bf16.gmra.mxu0 %v735
      %v749 = vpop.f32.mrf.mxu0
      %v750 = vadd.f32 %v711, %v749
      %v751 = vpop.f32.mrf.mxu0
      %v752 = vadd.f32 %v713, %v751
      %753 = vdwg.mxu0
      %v755 = vrot.slane %v629, 3
      %v758 = vsel %vm636, %v629, %v755
      %v760 = vsel %vm641, %v629, %v755
      %v762 = vrot.slane %v760, 1
      %v763 = vunpack.i.l.s16 %v758
      %v764 = vunpack.i.h.s16 %v758
      %v765 = vunpack.i.l.s16 %v762
      %s766 = scalar_lea.vmem %s2, 8
      %v767 = vld [vmem:[%s766] sm:$0xf]
      %v768 = vpack.i.b16 %v663, %v662
      %v769 = vpack.i.b16 %v665, %v664
      %v770 = vpack.i.b16 %v764, %v763
      %773 = vst [vmem:[#allocation1] ss:$9 sm:$0xff] %v768
      %s775 = scalar_lea.vmem [#allocation1], 1
      %776 = vst [vmem:[%s775] ss:$9 sm:$0xff] %v769
      %s777 = scalar_lea.vmem [#allocation1], 2
      %778 = vst [vmem:[%s777] ss:$9 sm:$0xff] %v677
      %s780 = scalar_lea.vmem [#allocation1], 3
      %781 = vst [vmem:[%s780] ss:$9 sm:$0xff] %v770
      %s783 = scalar_lea.vmem [#allocation1], 4
      %784 = vst [vmem:[%s783] ss:$9 sm:$0xff] %v765
      %v785 = vld [vmem:[#allocation1] sm:$0xff]
      %v786 = vsel %vm694, %v785, 0
      %v789 = vsel %vm697, %v767, 0
      %791 = vmatpush.bf16.msra.mxu0 0
      %792 = vmatpush.bf16.msra.mxu0 0
      %793 = vmatpush.bf16.msra.mxu0 0
      %794 = vmatpush.bf16.msra.mxu0 0
      %795 = vmatpush.bf16.msra.mxu0 0
      %796 = vmatpush.bf16.msra.mxu0 0
      %797 = vmatpush.bf16.msra.mxu0 0
      %798 = vmatpush.bf16.msra.mxu0 %v789
      %799 = vmatmul.bf16.gmra.mxu0 %v786
      %v800 = vpop.f32.mrf.mxu0
      %v801 = vadd.f32 0.0, %v800
      %v802 = vpop.f32.mrf.mxu0
      %v803 = vadd.f32 0.0, %v802
      %804 = vdwg.mxu0
      %v805 = vadd.f32 %v750, %v801
      %v806 = vadd.f32 %v752, %v803
      %v807 = vunpack.i.h.s16 %v762
      %s808 = scalar_lea.vmem %s2, 12
      %v809 = vld [vmem:[%s808] sm:$0xf]
      %v810 = vpack.i.b16 %v666, %v670
      %v811 = vpack.i.b16 %v671, %v667
      %v812 = vpack.i.b16 %v765, %v764
      %814 = vst [vmem:[#allocation1] ss:$9 sm:$0xff] %v717
      %s816 = scalar_lea.vmem [#allocation1], 1
      %817 = vst [vmem:[%s816] ss:$9 sm:$0xff] %v810
      %s819 = scalar_lea.vmem [#allocation1], 2
      %820 = vst [vmem:[%s819] ss:$9 sm:$0xff] %v811
      %s822 = scalar_lea.vmem [#allocation1], 3
      %823 = vst [vmem:[%s822] ss:$9 sm:$0xff] %v812
      %s825 = scalar_lea.vmem [#allocation1], 4
      %826 = vst [vmem:[%s825] ss:$9 sm:$0xff] %v807
      %v827 = vld [vmem:[#allocation1] sm:$0xff]
      %v828 = vsel %vm694, %v827, 0
      %v831 = vsel %vm697, %v809, 0
      %833 = vmatpush.bf16.msra.mxu0 0
      %834 = vmatpush.bf16.msra.mxu0 0
      %835 = vmatpush.bf16.msra.mxu0 0
      %836 = vmatpush.bf16.msra.mxu0 0
      %837 = vmatpush.bf16.msra.mxu0 0
      %838 = vmatpush.bf16.msra.mxu0 0
      %839 = vmatpush.bf16.msra.mxu0 0
      %840 = vmatpush.bf16.msra.mxu0 %v831
      %841 = vmatmul.bf16.gmra.mxu0 %v828
      %v842 = vpop.f32.mrf.mxu0
      %v843 = vadd.f32 0.0, %v842
      %v844 = vpop.f32.mrf.mxu0
      %v845 = vadd.f32 0.0, %v844
      %846 = vdwg.mxu0
      %v847 = vadd.f32 %v805, %v843
      %v848 = vadd.f32 %v806, %v845
      %849 = vst.msk [vmem:[%s170] sm:$0xff] %vm694, %v847
      %vm850 = vcmask 57344
      %851 = vst.msk [vmem:[%s170 + $0x8] sm:$0x1] %vm850, %v848
      %p852 = scmp.lt.s32.totalorder %s14, 1
      %s853 = scalar_select %p852, %s14, 1
      %s854 = smul.addr %s853, 2
      %s855 = smul.addr %s854, 8
      %s856 = scalar_lea.vmem %s3, %s855
      // Predicated region
      $region33: #{pixel_discriminator_forward.3} parent=31 // pred_check
        %p857 = pneg %p100
      $region34: #{pixel_discriminator_forward.3} parent=31 // pred_check_branch
        %859 = sbr.rel (%p857) target = $region36
      $region35: #{pixel_discriminator_forward.3} parent=31 // pred_region
        _
      $region36: #{pixel_discriminator_forward.3} parent=31 // pred_fallthru
        _
    $region32: #{pixel_discriminator_forward.3} parent=5 // pred_fallthru
      _
    %p860 = scmp.le.s32.totalorder 2, %s9
    // Predicated region
    $region37: #{pixel_discriminator_forward.3} parent=5 // pred_check
      %p861 = pneg %p860
    $region38: #{pixel_discriminator_forward.3} parent=5 // pred_check_branch
      %863 = sbr.rel (%p861) target = $region40
    $region39: #{pixel_discriminator_forward.3} parent=5 // pred_region
      %s864 = ssub.s32 %s9, 2
      // Predicated region
      $region41: #{pixel_discriminator_forward.3} parent=39 // pred_check
        %p865 = pneg %p106
      $region42: #{pixel_discriminator_forward.3} parent=39 // pred_check_branch
        %867 = sbr.rel (%p865) target = $region44
      $region43: #{pixel_discriminator_forward.3} parent=39 // pred_region
        %p868 = scmp.lt.s32.totalorder %s15, 1
        %s869 = scalar_select %p868, %s15, 1
        %s870 = smul.addr %s869, 2
        %s871 = smul.addr %s870, 8
        %s872 = scalar_lea.vmem %s3, %s871
      $region44: #{pixel_discriminator_forward.3} parent=39 // pred_fallthru
        _
    $region40: #{pixel_discriminator_forward.3} parent=5 // pred_fallthru
      _
  $region6: #{pixel_discriminator_forward.3} parent=0 // loop_footer
    %s13 = sadd.s32 1, %s9
  $region7: #{pixel_discriminator_forward.3} parent=0 // loop_footer_branch
    %8 = sbr.rel target = $region3
  $region8: #{pixel_discriminator_forward.3} parent=0 // loop_exit
    _

</llo_original>
